<compile_context>
chip_gen: v7x
topology: tpu7x:2x2x1
jax: 0.10.0
libtpu: 0.0.40
codegen_flags: <defaults>
</compile_context>

<pallas_src>
import functools

import jax
import jax.numpy as jnp
from jax.experimental import pallas as pl
from jax.experimental.pallas import tpu as pltpu


C1_OUT = 16   # conv1 out channels
C2_OUT = 32   # conv2 out channels
K1 = 8        # conv1 kernel size
K2 = 4        # conv2 kernel size
HID = 256     # Linear(32, 256) hidden width


# ----------------------------- Pallas kernel -------------------------------
def _cnn_fused_kernel(p1_ref, w1_ref, b1_ref, w2_ref, b2_ref, w3_ref, b3_ref,
                      wf_ref, bf_ref, o_ref, act1_ref, *, n_batch, ho1, wo1,
                      ho2, wo2):
    f32 = jnp.float32

    # ---- layer1: Conv2d(C, 16, 8) as one im2col matmul + bias + ReLU ------
    # p1_ref: (m1p, C*64) @ w1_ref: (C*64, 16) -> act1 (m1p, 16), VMEM-resident.
    # (act1 uses 16 of 128 lanes; fine at this footprint, see TODO above for
    # a packed layout when scaled up.)
    a1 = jnp.dot(p1_ref[...], w1_ref[...], preferred_element_type=f32)
    act1_ref[...] = jnp.maximum(a1 + b1_ref[...], 0.0)

    # ---- layer2: Conv2d(16, 32, 4) as ONE K=256 matmul per (n, ho) block --
    # Tap order of the lane-concat is (di, dj, cin), matching the merged
    # w2_ref (256, 32) slab built in prepare_params.
    act2_blocks = []
    for n in range(n_batch):
        for ho in range(ho2):
            taps = []
            for di in range(K2):
                for dj in range(K2):
                    start = n * (ho1 * wo1) + (ho + di) * wo1 + dj
                    taps.append(act1_ref[pl.ds(start, wo2), :])    # (wo2, 16)
            patch = jnp.concatenate(taps, axis=-1)                 # (wo2, 256)
            z2 = jnp.dot(patch, w2_ref[...],
                         preferred_element_type=f32) + b2_ref[...]
            act2_blocks.append(jnp.maximum(z2, 0.0))               # (wo2, 32)
    # Blocks along lanes so layers 3/4 are two well-shaped matmuls and the
    # final store is lane-dense (nblk*32 >= 128 lanes for nblk >= 4).
    act2_all = jnp.concatenate(act2_blocks, axis=-1)               # (wo2, nblk*32)

    # ---- layer3: Linear(32, 256) over the width axis, batched over blocks --
    # act3[m, blk*32+ch] = relu(sum_wo w3[m, wo] * act2_all[wo, blk*32+ch] + b3[m])
    act3 = jnp.maximum(
        jnp.dot(w3_ref[...], act2_all, preferred_element_type=f32)
        + b3_ref[...], 0.0)                                        # (256, nblk*32)

    # ---- fc: Linear(256, out) -> single lane-dense store -------------------
    out_all = jnp.dot(wf_ref[...], act3,
                      preferred_element_type=f32) + bf_ref[...]    # (out, nblk*32)
    o_ref[...] = out_all.astype(o_ref.dtype)


# ------------------------------ host wrappers -------------------------------
def prepare_params(params):
    """Hoist all weight/bias reshapes & transposes out of the hot path."""
    out_size = params["wf"].shape[0]
    return {
        "w1": params["w1"].reshape(C1_OUT, -1).T,                  # (C*64, 16)
        "b1": params["b1"].reshape(1, C1_OUT),
        # OIHW -> rows ordered (di, dj, cin): merged (256, 32) slab so conv2
        # is a single K=256 matmul per block (matches kernel concat order).
        "w2": jnp.transpose(params["w2"], (2, 3, 1, 0)).reshape(
            K2 * K2 * C1_OUT, C2_OUT),
        "b2": params["b2"].reshape(1, C2_OUT),
        "w3": params["w3"],                                        # (256, 32)
        "b3": params["b3"].reshape(HID, 1),
        "wf": params["wf"],                                        # (out, 256)
        "bf": params["bf"].reshape(out_size, 1),
    }


@jax.jit
def cnn_forward(pp, x):
    N, C, H, W = x.shape
    ho1, wo1 = H - K1 + 1, W - K1 + 1
    ho2, wo2 = ho1 - K2 + 1, wo1 - K2 + 1
    out_size = pp["wf"].shape[0]
    if wo2 != pp["w3"].shape[1]:
        raise ValueError(
            "nn.Linear(32,256) is applied to the conv output width; need "
            f"post-conv width == {pp['w3'].shape[1]}, got {wo2} (input W={W}).")

    # conv1 im2col as ONE XLA op; feature order (c, kh, kw) matches
    # w1.reshape(16, C*64). HIGHEST precision keeps the gather exact.
    # TODO(synk): at production shapes gather patches inside the kernel
    # instead of materializing the 64x-expanded im2col in HBM.
    patches = jax.lax.conv_general_dilated_patches(
        x, (K1, K1), (1, 1), "VALID",
        dimension_numbers=("NCHW", "OIHW", "NHWC"),
        precision=jax.lax.Precision.HIGHEST)            # (N, ho1, wo1, C*64)
    m1 = N * ho1 * wo1
    m1p = ((m1 + 7) // 8) * 8                           # sublane-align rows
    patches = jnp.pad(patches.reshape(m1, C * K1 * K1),
                      ((0, m1p - m1), (0, 0)))

    # The zero-padded act1 rows [m1, m1p) can never leak into conv2: the
    # largest act1 row index read is exactly m1 - 1 for any (N, H, W).
    assert ((N - 1) * ho1 * wo1 + (ho2 - 1 + K2 - 1) * wo1
            + (wo2 - 1) + (K2 - 1)) == m1 - 1

    nblk = N * ho2
    flops = 2 * (m1p * C * K1 * K1 * C1_OUT
                 + nblk * wo2 * (K2 * K2 * C1_OUT) * C2_OUT
                 + HID * wo2 * nblk * C2_OUT
                 + out_size * HID * nblk * C2_OUT)
    bytes_accessed = 4 * (patches.size + pp["w1"].size + pp["w2"].size
                          + pp["w3"].size + pp["wf"].size
                          + C1_OUT + C2_OUT + HID + out_size
                          + out_size * nblk * C2_OUT)

    kernel_args = (patches, pp["w1"], pp["b1"], pp["w2"], pp["b2"],
                   pp["w3"], pp["b3"], pp["wf"], pp["bf"])
    vmem_spec = functools.partial(pl.BlockSpec,
                                  memory_space=pltpu.MemorySpace.VMEM)

    out_all = pl.pallas_call(
        functools.partial(_cnn_fused_kernel, n_batch=N, ho1=ho1, wo1=wo1,
                          ho2=ho2, wo2=wo2),
        out_shape=jax.ShapeDtypeStruct((out_size, nblk * C2_OUT), jnp.float32),
        in_specs=[vmem_spec() for _ in kernel_args],
        out_specs=vmem_spec(),
        scratch_shapes=[pltpu.VMEM((m1p, C1_OUT), jnp.float32)],
        cost_estimate=pl.CostEstimate(flops=flops, transcendentals=0,
                                      bytes_accessed=bytes_accessed),
    )(*kernel_args)

    # out_all[o, (n*ho2 + ho)*32 + ch] == y[n, ch, ho, o]
    return out_all.reshape(out_size, N, ho2, C2_OUT).transpose(1, 3, 2, 0)


def init_params(key, in_channels, out_size):
    """Deterministic init matching PyTorch default shapes (uniform +-1/sqrt(fan_in))."""
    def u(k, shape, fan_in):
        bound = 1.0 / (fan_in ** 0.5)
        return jax.random.uniform(k, shape, jnp.float32, -bound, bound)

    ks = jax.random.split(key, 8)
    return {
        "w1": u(ks[0], (C1_OUT, in_channels, K1, K1), in_channels * K1 * K1),
        "b1": u(ks[1], (C1_OUT,), in_channels * K1 * K1),
        "w2": u(ks[2], (C2_OUT, C1_OUT, K2, K2), C1_OUT * K2 * K2),
        "b2": u(ks[3], (C2_OUT,), C1_OUT * K2 * K2),
        "w3": u(ks[4], (HID, 32), 32),
        "b3": u(ks[5], (HID,), 32),
        "wf": u(ks[6], (out_size, HID), HID),
        "bf": u(ks[7], (out_size,), HID),
    }


# ----------------------------- pure-JAX ref ---------------------------------
def cnn_ref(params, x):
    hp = jax.lax.Precision.HIGHEST

    def conv(x, w, b):
        y = jax.lax.conv_general_dilated(
            x, w, (1, 1), "VALID",
            dimension_numbers=("NCHW", "OIHW", "NCHW"), precision=hp)
        return y + b.reshape(1, -1, 1, 1)

    x = jnp.maximum(conv(x, params["w1"], params["b1"]), 0.0)
    x = jnp.maximum(conv(x, params["w2"], params["b2"]), 0.0)
    x = jnp.maximum(
        jnp.matmul(x, params["w3"].T, precision=hp) + params["b3"], 0.0)
    x = jnp.matmul(x, params["wf"].T, precision=hp) + params["bf"]
    return x


if __name__ == "__main__":
    in_channels, out_size = 4, 8
    # W=42 so that post-conv width is 42-7-3 = 32, matching nn.Linear(32, 256).
    N, H, W = 2, 12, 42

    key = jax.random.PRNGKey(0)
    kx, kp = jax.random.split(key)
    x = jax.random.normal(kx, (N, in_channels, H, W), jnp.float32)
    params = init_params(kp, in_channels, out_size)
    pp = prepare_params(params)          # weight prep done once, off hot path

    out = jax.block_until_ready(cnn_forward(pp, x))   # (2, 32, 2, 8)
    ref = jax.block_until_ready(cnn_ref(params, x))

    assert out.shape == (N, C2_OUT, H - 10, out_size), out.shape
    assert jnp.allclose(out, ref, rtol=1e-3, atol=1e-3), float(
        jnp.max(jnp.abs(out - ref)))
    print("KERNEL_OK")
</pallas_src>

<mosaic_0001>
module attributes {stable_mosaic.version = 11 : i64} {
  func.func @_cnn_fused_kernel(%arg0: memref<352x256xf32, #tpu.memory_space<vmem>>, %arg1: memref<256x16xf32, #tpu.memory_space<vmem>>, %arg2: memref<1x16xf32, #tpu.memory_space<vmem>>, %arg3: memref<256x32xf32, #tpu.memory_space<vmem>>, %arg4: memref<1x32xf32, #tpu.memory_space<vmem>>, %arg5: memref<256x32xf32, #tpu.memory_space<vmem>>, %arg6: memref<256x1xf32, #tpu.memory_space<vmem>>, %arg7: memref<8x256xf32, #tpu.memory_space<vmem>>, %arg8: memref<8x1xf32, #tpu.memory_space<vmem>>, %arg9: memref<8x128xf32, #tpu.memory_space<vmem>>, %arg10: memref<352x16xf32, #tpu.memory_space<vmem>>) attributes {dimension_semantics = [], scalar_prefetch = 0 : i64, scratch_operands = 1 : i64, tpu.core_type = #tpu.core_type<tc>} {
    %c0 = arith.constant 0 : index
    %c0_0 = arith.constant 0 : index
    %0 = vector.load %arg0[%c0, %c0_0] : memref<352x256xf32, #tpu.memory_space<vmem>>, vector<352x256xf32>
    %c0_1 = arith.constant 0 : index
    %c0_2 = arith.constant 0 : index
    %1 = vector.load %arg1[%c0_1, %c0_2] : memref<256x16xf32, #tpu.memory_space<vmem>>, vector<256x16xf32>
    %cst = arith.constant dense<0.000000e+00> : vector<352x16xf32>
    %2 = tpu.matmul %0, %1, %cst {dimension_numbers = #tpu.dot_dimension_numbers<[1], [0], [0], [1], [0, 0, 1, 1], [], []>} : vector<352x256xf32>, vector<256x16xf32>, vector<352x16xf32> -> vector<352x16xf32>
    %c0_3 = arith.constant 0 : index
    %c0_4 = arith.constant 0 : index
    %3 = vector.load %arg2[%c0_3, %c0_4] : memref<1x16xf32, #tpu.memory_space<vmem>>, vector<1x16xf32>
    %4 = vector.broadcast %3 : vector<1x16xf32> to vector<352x16xf32>
    %5 = arith.addf %2, %4 : vector<352x16xf32>
    %cst_5 = arith.constant 0.000000e+00 : f32
    %6 = vector.broadcast %cst_5 : f32 to vector<352x16xf32>
    %7 = arith.maximumf %5, %6 : vector<352x16xf32>
    %c0_6 = arith.constant 0 : index
    %c0_7 = arith.constant 0 : index
    %8 = vector.load %arg10[%c0_6, %c0_7] : memref<352x16xf32, #tpu.memory_space<vmem>>, vector<352x16xf32>
    tpu.vector_store %arg10[%c0_6, %c0_7], %7 {strides = array<i32>} : memref<352x16xf32, #tpu.memory_space<vmem>>, vector<352x16xf32>,
    %c0_8 = arith.constant 0 : index
    %c0_9 = arith.constant 0 : index
    %9 = vector.load %arg10[%c0_8, %c0_9] : memref<352x16xf32, #tpu.memory_space<vmem>>, vector<32x16xf32>
    %c1 = arith.constant 1 : index
    %c0_10 = arith.constant 0 : index
    %10 = vector.load %arg10[%c1, %c0_10] : memref<352x16xf32, #tpu.memory_space<vmem>>, vector<32x16xf32>
    %c2 = arith.constant 2 : index
    %c0_11 = arith.constant 0 : index
    %11 = vector.load %arg10[%c2, %c0_11] : memref<352x16xf32, #tpu.memory_space<vmem>>, vector<32x16xf32>
    %c3 = arith.constant 3 : index
    %c0_12 = arith.constant 0 : index
    %12 = vector.load %arg10[%c3, %c0_12] : memref<352x16xf32, #tpu.memory_space<vmem>>, vector<32x16xf32>
    %c35 = arith.constant 35 : index
    %c0_13 = arith.constant 0 : index
    %13 = vector.load %arg10[%c35, %c0_13] : memref<352x16xf32, #tpu.memory_space<vmem>>, vector<32x16xf32>
    %c36 = arith.constant 36 : index
    %c0_14 = arith.constant 0 : index
    %14 = vector.load %arg10[%c36, %c0_14] : memref<352x16xf32, #tpu.memory_space<vmem>>, vector<32x16xf32>
    %c37 = arith.constant 37 : index
    %c0_15 = arith.constant 0 : index
    %15 = vector.load %arg10[%c37, %c0_15] : memref<352x16xf32, #tpu.memory_space<vmem>>, vector<32x16xf32>
    %c38 = arith.constant 38 : index
    %c0_16 = arith.constant 0 : index
    %16 = vector.load %arg10[%c38, %c0_16] : memref<352x16xf32, #tpu.memory_space<vmem>>, vector<32x16xf32>
    %c70 = arith.constant 70 : index
    %c0_17 = arith.constant 0 : index
    %17 = vector.load %arg10[%c70, %c0_17] : memref<352x16xf32, #tpu.memory_space<vmem>>, vector<32x16xf32>
    %c71 = arith.constant 71 : index
    %c0_18 = arith.constant 0 : index
    %18 = vector.load %arg10[%c71, %c0_18] : memref<352x16xf32, #tpu.memory_space<vmem>>, vector<32x16xf32>
    %c72 = arith.constant 72 : index
    %c0_19 = arith.constant 0 : index
    %19 = vector.load %arg10[%c72, %c0_19] : memref<352x16xf32, #tpu.memory_space<vmem>>, vector<32x16xf32>
    %c73 = arith.constant 73 : index
    %c0_20 = arith.constant 0 : index
    %20 = vector.load %arg10[%c73, %c0_20] : memref<352x16xf32, #tpu.memory_space<vmem>>, vector<32x16xf32>
    %c105 = arith.constant 105 : index
    %c0_21 = arith.constant 0 : index
    %21 = vector.load %arg10[%c105, %c0_21] : memref<352x16xf32, #tpu.memory_space<vmem>>, vector<32x16xf32>
    %c106 = arith.constant 106 : index
    %c0_22 = arith.constant 0 : index
    %22 = vector.load %arg10[%c106, %c0_22] : memref<352x16xf32, #tpu.memory_space<vmem>>, vector<32x16xf32>
    %c107 = arith.constant 107 : index
    %c0_23 = arith.constant 0 : index
    %23 = vector.load %arg10[%c107, %c0_23] : memref<352x16xf32, #tpu.memory_space<vmem>>, vector<32x16xf32>
    %c108 = arith.constant 108 : index
    %c0_24 = arith.constant 0 : index
    %24 = vector.load %arg10[%c108, %c0_24] : memref<352x16xf32, #tpu.memory_space<vmem>>, vector<32x16xf32>
    %25 = tpu.concatenate %9, %10, %11, %12, %13, %14, %15, %16, %17, %18, %19, %20, %21, %22, %23, %24 in 1 : vector<32x16xf32>, vector<32x16xf32>, vector<32x16xf32>, vector<32x16xf32>, vector<32x16xf32>, vector<32x16xf32>, vector<32x16xf32>, vector<32x16xf32>, vector<32x16xf32>, vector<32x16xf32>, vector<32x16xf32>, vector<32x16xf32>, vector<32x16xf32>, vector<32x16xf32>, vector<32x16xf32>, vector<32x16xf32> -> vector<32x256xf32>
    %c0_25 = arith.constant 0 : index
    %c0_26 = arith.constant 0 : index
    %26 = vector.load %arg3[%c0_25, %c0_26] : memref<256x32xf32, #tpu.memory_space<vmem>>, vector<256x32xf32>
    %cst_27 = arith.constant dense<0.000000e+00> : vector<32x32xf32>
    %27 = tpu.matmul %25, %26, %cst_27 {dimension_numbers = #tpu.dot_dimension_numbers<[1], [0], [0], [1], [0, 0, 1, 1], [], []>} : vector<32x256xf32>, vector<256x32xf32>, vector<32x32xf32> -> vector<32x32xf32>
    %c0_28 = arith.constant 0 : index
    %c0_29 = arith.constant 0 : index
    %28 = vector.load %arg4[%c0_28, %c0_29] : memref<1x32xf32, #tpu.memory_space<vmem>>, vector<1x32xf32>
    %29 = vector.broadcast %28 : vector<1x32xf32> to vector<32x32xf32>
    %30 = arith.addf %27, %29 : vector<32x32xf32>
    %cst_30 = arith.constant 0.000000e+00 : f32
    %31 = vector.broadcast %cst_30 : f32 to vector<32x32xf32>
    %32 = arith.maximumf %30, %31 : vector<32x32xf32>
    %c35_31 = arith.constant 35 : index
    %c0_32 = arith.constant 0 : index
    %33 = vector.load %arg10[%c35_31, %c0_32] : memref<352x16xf32, #tpu.memory_space<vmem>>, vector<32x16xf32>
    %c36_33 = arith.constant 36 : index
    %c0_34 = arith.constant 0 : index
    %34 = vector.load %arg10[%c36_33, %c0_34] : memref<352x16xf32, #tpu.memory_space<vmem>>, vector<32x16xf32>
    %c37_35 = arith.constant 37 : index
    %c0_36 = arith.constant 0 : index
    %35 = vector.load %arg10[%c37_35, %c0_36] : memref<352x16xf32, #tpu.memory_space<vmem>>, vector<32x16xf32>
    %c38_37 = arith.constant 38 : index
    %c0_38 = arith.constant 0 : index
    %36 = vector.load %arg10[%c38_37, %c0_38] : memref<352x16xf32, #tpu.memory_space<vmem>>, vector<32x16xf32>
    %c70_39 = arith.constant 70 : index
    %c0_40 = arith.constant 0 : index
    %37 = vector.load %arg10[%c70_39, %c0_40] : memref<352x16xf32, #tpu.memory_space<vmem>>, vector<32x16xf32>
    %c71_41 = arith.constant 71 : index
    %c0_42 = arith.constant 0 : index
    %38 = vector.load %arg10[%c71_41, %c0_42] : memref<352x16xf32, #tpu.memory_space<vmem>>, vector<32x16xf32>
    %c72_43 = arith.constant 72 : index
    %c0_44 = arith.constant 0 : index
    %39 = vector.load %arg10[%c72_43, %c0_44] : memref<352x16xf32, #tpu.memory_space<vmem>>, vector<32x16xf32>
    %c73_45 = arith.constant 73 : index
    %c0_46 = arith.constant 0 : index
    %40 = vector.load %arg10[%c73_45, %c0_46] : memref<352x16xf32, #tpu.memory_space<vmem>>, vector<32x16xf32>
    %c105_47 = arith.constant 105 : index
    %c0_48 = arith.constant 0 : index
    %41 = vector.load %arg10[%c105_47, %c0_48] : memref<352x16xf32, #tpu.memory_space<vmem>>, vector<32x16xf32>
    %c106_49 = arith.constant 106 : index
    %c0_50 = arith.constant 0 : index
    %42 = vector.load %arg10[%c106_49, %c0_50] : memref<352x16xf32, #tpu.memory_space<vmem>>, vector<32x16xf32>
    %c107_51 = arith.constant 107 : index
    %c0_52 = arith.constant 0 : index
    %43 = vector.load %arg10[%c107_51, %c0_52] : memref<352x16xf32, #tpu.memory_space<vmem>>, vector<32x16xf32>
    %c108_53 = arith.constant 108 : index
    %c0_54 = arith.constant 0 : index
    %44 = vector.load %arg10[%c108_53, %c0_54] : memref<352x16xf32, #tpu.memory_space<vmem>>, vector<32x16xf32>
    %c140 = arith.constant 140 : index
    %c0_55 = arith.constant 0 : index
    %45 = vector.load %arg10[%c140, %c0_55] : memref<352x16xf32, #tpu.memory_space<vmem>>, vector<32x16xf32>
    %c141 = arith.constant 141 : index
    %c0_56 = arith.constant 0 : index
    %46 = vector.load %arg10[%c141, %c0_56] : memref<352x16xf32, #tpu.memory_space<vmem>>, vector<32x16xf32>
    %c142 = arith.constant 142 : index
    %c0_57 = arith.constant 0 : index
    %47 = vector.load %arg10[%c142, %c0_57] : memref<352x16xf32, #tpu.memory_space<vmem>>, vector<32x16xf32>
    %c143 = arith.constant 143 : index
    %c0_58 = arith.constant 0 : index
    %48 = vector.load %arg10[%c143, %c0_58] : memref<352x16xf32, #tpu.memory_space<vmem>>, vector<32x16xf32>
    %49 = tpu.concatenate %33, %34, %35, %36, %37, %38, %39, %40, %41, %42, %43, %44, %45, %46, %47, %48 in 1 : vector<32x16xf32>, vector<32x16xf32>, vector<32x16xf32>, vector<32x16xf32>, vector<32x16xf32>, vector<32x16xf32>, vector<32x16xf32>, vector<32x16xf32>, vector<32x16xf32>, vector<32x16xf32>, vector<32x16xf32>, vector<32x16xf32>, vector<32x16xf32>, vector<32x16xf32>, vector<32x16xf32>, vector<32x16xf32> -> vector<32x256xf32>
    %c0_59 = arith.constant 0 : index
    %c0_60 = arith.constant 0 : index
    %50 = vector.load %arg3[%c0_59, %c0_60] : memref<256x32xf32, #tpu.memory_space<vmem>>, vector<256x32xf32>
    %cst_61 = arith.constant dense<0.000000e+00> : vector<32x32xf32>
    %51 = tpu.matmul %49, %50, %cst_61 {dimension_numbers = #tpu.dot_dimension_numbers<[1], [0], [0], [1], [0, 0, 1, 1], [], []>} : vector<32x256xf32>, vector<256x32xf32>, vector<32x32xf32> -> vector<32x32xf32>
    %c0_62 = arith.constant 0 : index
    %c0_63 = arith.constant 0 : index
    %52 = vector.load %arg4[%c0_62, %c0_63] : memref<1x32xf32, #tpu.memory_space<vmem>>, vector<1x32xf32>
    %53 = vector.broadcast %52 : vector<1x32xf32> to vector<32x32xf32>
    %54 = arith.addf %51, %53 : vector<32x32xf32>
    %cst_64 = arith.constant 0.000000e+00 : f32
    %55 = vector.broadcast %cst_64 : f32 to vector<32x32xf32>
    %56 = arith.maximumf %54, %55 : vector<32x32xf32>
    %c175 = arith.constant 175 : index
    %c0_65 = arith.constant 0 : index
    %57 = vector.load %arg10[%c175, %c0_65] : memref<352x16xf32, #tpu.memory_space<vmem>>, vector<32x16xf32>
    %c176 = arith.constant 176 : index
    %c0_66 = arith.constant 0 : index
    %58 = vector.load %arg10[%c176, %c0_66] : memref<352x16xf32, #tpu.memory_space<vmem>>, vector<32x16xf32>
    %c177 = arith.constant 177 : index
    %c0_67 = arith.constant 0 : index
    %59 = vector.load %arg10[%c177, %c0_67] : memref<352x16xf32, #tpu.memory_space<vmem>>, vector<32x16xf32>
    %c178 = arith.constant 178 : index
    %c0_68 = arith.constant 0 : index
    %60 = vector.load %arg10[%c178, %c0_68] : memref<352x16xf32, #tpu.memory_space<vmem>>, vector<32x16xf32>
    %c210 = arith.constant 210 : index
    %c0_69 = arith.constant 0 : index
    %61 = vector.load %arg10[%c210, %c0_69] : memref<352x16xf32, #tpu.memory_space<vmem>>, vector<32x16xf32>
    %c211 = arith.constant 211 : index
    %c0_70 = arith.constant 0 : index
    %62 = vector.load %arg10[%c211, %c0_70] : memref<352x16xf32, #tpu.memory_space<vmem>>, vector<32x16xf32>
    %c212 = arith.constant 212 : index
    %c0_71 = arith.constant 0 : index
    %63 = vector.load %arg10[%c212, %c0_71] : memref<352x16xf32, #tpu.memory_space<vmem>>, vector<32x16xf32>
    %c213 = arith.constant 213 : index
    %c0_72 = arith.constant 0 : index
    %64 = vector.load %arg10[%c213, %c0_72] : memref<352x16xf32, #tpu.memory_space<vmem>>, vector<32x16xf32>
    %c245 = arith.constant 245 : index
    %c0_73 = arith.constant 0 : index
    %65 = vector.load %arg10[%c245, %c0_73] : memref<352x16xf32, #tpu.memory_space<vmem>>, vector<32x16xf32>
    %c246 = arith.constant 246 : index
    %c0_74 = arith.constant 0 : index
    %66 = vector.load %arg10[%c246, %c0_74] : memref<352x16xf32, #tpu.memory_space<vmem>>, vector<32x16xf32>
    %c247 = arith.constant 247 : index
    %c0_75 = arith.constant 0 : index
    %67 = vector.load %arg10[%c247, %c0_75] : memref<352x16xf32, #tpu.memory_space<vmem>>, vector<32x16xf32>
    %c248 = arith.constant 248 : index
    %c0_76 = arith.constant 0 : index
    %68 = vector.load %arg10[%c248, %c0_76] : memref<352x16xf32, #tpu.memory_space<vmem>>, vector<32x16xf32>
    %c280 = arith.constant 280 : index
    %c0_77 = arith.constant 0 : index
    %69 = vector.load %arg10[%c280, %c0_77] : memref<352x16xf32, #tpu.memory_space<vmem>>, vector<32x16xf32>
    %c281 = arith.constant 281 : index
    %c0_78 = arith.constant 0 : index
    %70 = vector.load %arg10[%c281, %c0_78] : memref<352x16xf32, #tpu.memory_space<vmem>>, vector<32x16xf32>
    %c282 = arith.constant 282 : index
    %c0_79 = arith.constant 0 : index
    %71 = vector.load %arg10[%c282, %c0_79] : memref<352x16xf32, #tpu.memory_space<vmem>>, vector<32x16xf32>
    %c283 = arith.constant 283 : index
    %c0_80 = arith.constant 0 : index
    %72 = vector.load %arg10[%c283, %c0_80] : memref<352x16xf32, #tpu.memory_space<vmem>>, vector<32x16xf32>
    %73 = tpu.concatenate %57, %58, %59, %60, %61, %62, %63, %64, %65, %66, %67, %68, %69, %70, %71, %72 in 1 : vector<32x16xf32>, vector<32x16xf32>, vector<32x16xf32>, vector<32x16xf32>, vector<32x16xf32>, vector<32x16xf32>, vector<32x16xf32>, vector<32x16xf32>, vector<32x16xf32>, vector<32x16xf32>, vector<32x16xf32>, vector<32x16xf32>, vector<32x16xf32>, vector<32x16xf32>, vector<32x16xf32>, vector<32x16xf32> -> vector<32x256xf32>
    %c0_81 = arith.constant 0 : index
    %c0_82 = arith.constant 0 : index
    %74 = vector.load %arg3[%c0_81, %c0_82] : memref<256x32xf32, #tpu.memory_space<vmem>>, vector<256x32xf32>
    %cst_83 = arith.constant dense<0.000000e+00> : vector<32x32xf32>
    %75 = tpu.matmul %73, %74, %cst_83 {dimension_numbers = #tpu.dot_dimension_numbers<[1], [0], [0], [1], [0, 0, 1, 1], [], []>} : vector<32x256xf32>, vector<256x32xf32>, vector<32x32xf32> -> vector<32x32xf32>
    %c0_84 = arith.constant 0 : index
    %c0_85 = arith.constant 0 : index
    %76 = vector.load %arg4[%c0_84, %c0_85] : memref<1x32xf32, #tpu.memory_space<vmem>>, vector<1x32xf32>
    %77 = vector.broadcast %76 : vector<1x32xf32> to vector<32x32xf32>
    %78 = arith.addf %75, %77 : vector<32x32xf32>
    %cst_86 = arith.constant 0.000000e+00 : f32
    %79 = vector.broadcast %cst_86 : f32 to vector<32x32xf32>
    %80 = arith.maximumf %78, %79 : vector<32x32xf32>
    %c210_87 = arith.constant 210 : index
    %c0_88 = arith.constant 0 : index
    %81 = vector.load %arg10[%c210_87, %c0_88] : memref<352x16xf32, #tpu.memory_space<vmem>>, vector<32x16xf32>
    %c211_89 = arith.constant 211 : index
    %c0_90 = arith.constant 0 : index
    %82 = vector.load %arg10[%c211_89, %c0_90] : memref<352x16xf32, #tpu.memory_space<vmem>>, vector<32x16xf32>
    %c212_91 = arith.constant 212 : index
    %c0_92 = arith.constant 0 : index
    %83 = vector.load %arg10[%c212_91, %c0_92] : memref<352x16xf32, #tpu.memory_space<vmem>>, vector<32x16xf32>
    %c213_93 = arith.constant 213 : index
    %c0_94 = arith.constant 0 : index
    %84 = vector.load %arg10[%c213_93, %c0_94] : memref<352x16xf32, #tpu.memory_space<vmem>>, vector<32x16xf32>
    %c245_95 = arith.constant 245 : index
    %c0_96 = arith.constant 0 : index
    %85 = vector.load %arg10[%c245_95, %c0_96] : memref<352x16xf32, #tpu.memory_space<vmem>>, vector<32x16xf32>
    %c246_97 = arith.constant 246 : index
    %c0_98 = arith.constant 0 : index
    %86 = vector.load %arg10[%c246_97, %c0_98] : memref<352x16xf32, #tpu.memory_space<vmem>>, vector<32x16xf32>
    %c247_99 = arith.constant 247 : index
    %c0_100 = arith.constant 0 : index
    %87 = vector.load %arg10[%c247_99, %c0_100] : memref<352x16xf32, #tpu.memory_space<vmem>>, vector<32x16xf32>
    %c248_101 = arith.constant 248 : index
    %c0_102 = arith.constant 0 : index
    %88 = vector.load %arg10[%c248_101, %c0_102] : memref<352x16xf32, #tpu.memory_space<vmem>>, vector<32x16xf32>
    %c280_103 = arith.constant 280 : index
    %c0_104 = arith.constant 0 : index
    %89 = vector.load %arg10[%c280_103, %c0_104] : memref<352x16xf32, #tpu.memory_space<vmem>>, vector<32x16xf32>
    %c281_105 = arith.constant 281 : index
    %c0_106 = arith.constant 0 : index
    %90 = vector.load %arg10[%c281_105, %c0_106] : memref<352x16xf32, #tpu.memory_space<vmem>>, vector<32x16xf32>
    %c282_107 = arith.constant 282 : index
    %c0_108 = arith.constant 0 : index
    %91 = vector.load %arg10[%c282_107, %c0_108] : memref<352x16xf32, #tpu.memory_space<vmem>>, vector<32x16xf32>
    %c283_109 = arith.constant 283 : index
    %c0_110 = arith.constant 0 : index
    %92 = vector.load %arg10[%c283_109, %c0_110] : memref<352x16xf32, #tpu.memory_space<vmem>>, vector<32x16xf32>
    %c315 = arith.constant 315 : index
    %c0_111 = arith.constant 0 : index
    %93 = vector.load %arg10[%c315, %c0_111] : memref<352x16xf32, #tpu.memory_space<vmem>>, vector<32x16xf32>
    %c316 = arith.constant 316 : index
    %c0_112 = arith.constant 0 : index
    %94 = vector.load %arg10[%c316, %c0_112] : memref<352x16xf32, #tpu.memory_space<vmem>>, vector<32x16xf32>
    %c317 = arith.constant 317 : index
    %c0_113 = arith.constant 0 : index
    %95 = vector.load %arg10[%c317, %c0_113] : memref<352x16xf32, #tpu.memory_space<vmem>>, vector<32x16xf32>
    %c318 = arith.constant 318 : index
    %c0_114 = arith.constant 0 : index
    %96 = vector.load %arg10[%c318, %c0_114] : memref<352x16xf32, #tpu.memory_space<vmem>>, vector<32x16xf32>
    %97 = tpu.concatenate %81, %82, %83, %84, %85, %86, %87, %88, %89, %90, %91, %92, %93, %94, %95, %96 in 1 : vector<32x16xf32>, vector<32x16xf32>, vector<32x16xf32>, vector<32x16xf32>, vector<32x16xf32>, vector<32x16xf32>, vector<32x16xf32>, vector<32x16xf32>, vector<32x16xf32>, vector<32x16xf32>, vector<32x16xf32>, vector<32x16xf32>, vector<32x16xf32>, vector<32x16xf32>, vector<32x16xf32>, vector<32x16xf32> -> vector<32x256xf32>
    %c0_115 = arith.constant 0 : index
    %c0_116 = arith.constant 0 : index
    %98 = vector.load %arg3[%c0_115, %c0_116] : memref<256x32xf32, #tpu.memory_space<vmem>>, vector<256x32xf32>
    %cst_117 = arith.constant dense<0.000000e+00> : vector<32x32xf32>
    %99 = tpu.matmul %97, %98, %cst_117 {dimension_numbers = #tpu.dot_dimension_numbers<[1], [0], [0], [1], [0, 0, 1, 1], [], []>} : vector<32x256xf32>, vector<256x32xf32>, vector<32x32xf32> -> vector<32x32xf32>
    %c0_118 = arith.constant 0 : index
    %c0_119 = arith.constant 0 : index
    %100 = vector.load %arg4[%c0_118, %c0_119] : memref<1x32xf32, #tpu.memory_space<vmem>>, vector<1x32xf32>
    %101 = vector.broadcast %100 : vector<1x32xf32> to vector<32x32xf32>
    %102 = arith.addf %99, %101 : vector<32x32xf32>
    %cst_120 = arith.constant 0.000000e+00 : f32
    %103 = vector.broadcast %cst_120 : f32 to vector<32x32xf32>
    %104 = arith.maximumf %102, %103 : vector<32x32xf32>
    %105 = tpu.concatenate %32, %56, %80, %104 in 1 : vector<32x32xf32>, vector<32x32xf32>, vector<32x32xf32>, vector<32x32xf32> -> vector<32x128xf32>
    %c0_121 = arith.constant 0 : index
    %c0_122 = arith.constant 0 : index
    %106 = vector.load %arg5[%c0_121, %c0_122] : memref<256x32xf32, #tpu.memory_space<vmem>>, vector<256x32xf32>
    %cst_123 = arith.constant dense<0.000000e+00> : vector<256x128xf32>
    %107 = tpu.matmul %106, %105, %cst_123 {dimension_numbers = #tpu.dot_dimension_numbers<[1], [0], [0], [1], [0, 0, 1, 1], [], []>} : vector<256x32xf32>, vector<32x128xf32>, vector<256x128xf32> -> vector<256x128xf32>
    %c0_124 = arith.constant 0 : index
    %c0_125 = arith.constant 0 : index
    %108 = vector.load %arg6[%c0_124, %c0_125] : memref<256x1xf32, #tpu.memory_space<vmem>>, vector<256x1xf32>
    %109 = vector.broadcast %108 : vector<256x1xf32> to vector<256x128xf32>
    %110 = arith.addf %107, %109 : vector<256x128xf32>
    %cst_126 = arith.constant 0.000000e+00 : f32
    %111 = vector.broadcast %cst_126 : f32 to vector<256x128xf32>
    %112 = arith.maximumf %110, %111 : vector<256x128xf32>
    %c0_127 = arith.constant 0 : index
    %c0_128 = arith.constant 0 : index
    %113 = vector.load %arg7[%c0_127, %c0_128] : memref<8x256xf32, #tpu.memory_space<vmem>>, vector<8x256xf32>
    %cst_129 = arith.constant dense<0.000000e+00> : vector<8x128xf32>
    %114 = tpu.matmul %113, %112, %cst_129 {dimension_numbers = #tpu.dot_dimension_numbers<[1], [0], [0], [1], [0, 0, 1, 1], [], []>} : vector<8x256xf32>, vector<256x128xf32>, vector<8x128xf32> -> vector<8x128xf32>
    %c0_130 = arith.constant 0 : index
    %c0_131 = arith.constant 0 : index
    %115 = vector.load %arg8[%c0_130, %c0_131] : memref<8x1xf32, #tpu.memory_space<vmem>>, vector<8x1xf32>
    %116 = vector.broadcast %115 : vector<8x1xf32> to vector<8x128xf32>
    %117 = arith.addf %114, %116 : vector<8x128xf32>
    %c0_132 = arith.constant 0 : index
    %c0_133 = arith.constant 0 : index
    %118 = vector.load %arg9[%c0_132, %c0_133] : memref<8x128xf32, #tpu.memory_space<vmem>>, vector<8x128xf32>
    tpu.vector_store %arg9[%c0_132, %c0_133], %117 {strides = array<i32>} : memref<8x128xf32, #tpu.memory_space<vmem>>, vector<8x128xf32>,
    return
  }
}

</mosaic_0001>

<llo_original>
// kernel: cnn_forward.1
$region0: #{cnn_forward.1}
  #allocation0 [shape = 'u32[]', space=smem, size = 0x4, offset = 0x4, fixed_abs, tag = 'smem constant byte address 0x4 - core index']
  #allocation1 [shape = 'u32[144,128]{1,0:T(1,128)}', space=vmem, size = 0x12000, scoped, tag = 'internal scratch']
  #allocation2 [shape = 'f32[352,16]{1,0:T(8,128)}', space=vmem, size = 0x2c000, scoped, tag = 'scratch operand']
  %s0 = inlined_call_operand.vmem [shape: f32[352,256], index: 0, kind: input, shape index: {}]
  %s1 = inlined_call_operand.vmem [shape: f32[256,16], index: 1, kind: input, shape index: {}]
  %s2 = inlined_call_operand.vmem [shape: f32[1,16], index: 2, kind: input, shape index: {}]
  %s3 = inlined_call_operand.vmem [shape: f32[256,32], index: 3, kind: input, shape index: {}]
  %s4 = inlined_call_operand.vmem [shape: f32[1,32], index: 4, kind: input, shape index: {}]
  %s5 = inlined_call_operand.vmem [shape: f32[256,32], index: 5, kind: input, shape index: {}]
  %s6 = inlined_call_operand.vmem [shape: f32[256,1], index: 6, kind: input, shape index: {}]
  %s7 = inlined_call_operand.vmem [shape: f32[8,256], index: 7, kind: input, shape index: {}]
  %s8 = inlined_call_operand.vmem [shape: f32[8,1], index: 8, kind: input, shape index: {}]
  %s9 = inlined_call_operand.vmem [shape: f32[8,128], index: 9, kind: output, shape index: {}]
  %s10 = sld [smem:[#allocation0]]
  $region46: #{cnn_forward.1} parent=0
    _
  %s12 = ssub.s32 1, %s10
  %s13 = scalar_select 0, %s12, %s10
  // Predicated region
  $region2: #{cnn_forward.1} parent=0 // pred_check
    _
  $region3: #{cnn_forward.1} parent=0 // pred_check_branch
    %15 = sbr.rel (0) target = $region5
  $region4: #{cnn_forward.1} parent=0 // pred_region
    _
  $region5: #{cnn_forward.1} parent=0 // pred_fallthru
    _
  // Predicated region
  $region6: #{cnn_forward.1} parent=0 // pred_check
    _
  $region7: #{cnn_forward.1} parent=0 // pred_check_branch
    %17 = sbr.rel (0) target = $region9
  $region8: #{cnn_forward.1} parent=0 // pred_region
    _
  $region9: #{cnn_forward.1} parent=0 // pred_fallthru
    _
  // Predicated region
  $region10: #{cnn_forward.1} parent=0 // pred_check
    _
  $region11: #{cnn_forward.1} parent=0 // pred_check_branch
    %19 = sbr.rel (0) target = $region13
  $region12: #{cnn_forward.1} parent=0 // pred_region
    _
  $region13: #{cnn_forward.1} parent=0 // pred_fallthru
    _
  // Predicated region
  $region14: #{cnn_forward.1} parent=0 // pred_check
    _
  $region15: #{cnn_forward.1} parent=0 // pred_check_branch
    %21 = sbr.rel (0) target = $region17
  $region16: #{cnn_forward.1} parent=0 // pred_region
    _
  $region17: #{cnn_forward.1} parent=0 // pred_fallthru
    _
  // Predicated region
  $region18: #{cnn_forward.1} parent=0 // pred_check
    _
  $region19: #{cnn_forward.1} parent=0 // pred_check_branch
    %23 = sbr.rel (0) target = $region21
  $region20: #{cnn_forward.1} parent=0 // pred_region
    _
  $region21: #{cnn_forward.1} parent=0 // pred_fallthru
    _
  // Predicated region
  $region22: #{cnn_forward.1} parent=0 // pred_check
    _
  $region23: #{cnn_forward.1} parent=0 // pred_check_branch
    %25 = sbr.rel (0) target = $region25
  $region24: #{cnn_forward.1} parent=0 // pred_region
    _
  $region25: #{cnn_forward.1} parent=0 // pred_fallthru
    _
  // Predicated region
  $region26: #{cnn_forward.1} parent=0 // pred_check
    _
  $region27: #{cnn_forward.1} parent=0 // pred_check_branch
    %27 = sbr.rel (0) target = $region29
  $region28: #{cnn_forward.1} parent=0 // pred_region
    _
  $region29: #{cnn_forward.1} parent=0 // pred_fallthru
    _
  // Predicated region
  $region30: #{cnn_forward.1} parent=0 // pred_check
    _
  $region31: #{cnn_forward.1} parent=0 // pred_check_branch
    %29 = sbr.rel (0) target = $region33
  $region32: #{cnn_forward.1} parent=0 // pred_region
    _
  $region33: #{cnn_forward.1} parent=0 // pred_fallthru
    _
  // Predicated region
  $region34: #{cnn_forward.1} parent=0 // pred_check
    _
  $region35: #{cnn_forward.1} parent=0 // pred_check_branch
    %31 = sbr.rel (0) target = $region37
  $region36: #{cnn_forward.1} parent=0 // pred_region
    _
  $region37: #{cnn_forward.1} parent=0 // pred_fallthru
    _
  %v32 = vld [vmem:[%s0] sm:$0xff]
  %v33 = vld [vmem:[%s0 + $0x8] sm:$0xff]
  %v34 = vld [vmem:[%s0 + $0x10] sm:$0xff]
  %v35 = vld [vmem:[%s0 + $0x18] sm:$0xff]
  %v36 = vld [vmem:[%s0 + $0x20] sm:$0xff]
  %v37 = vld [vmem:[%s0 + $0x28] sm:$0xff]
  %v38 = vld [vmem:[%s0 + $0x30] sm:$0xff]
  %v39 = vld [vmem:[%s0 + $0x38] sm:$0xff]
  %v40 = vld [vmem:[%s0 + $0x40] sm:$0xff]
  %v41 = vld [vmem:[%s0 + $0x48] sm:$0xff]
  %v42 = vld [vmem:[%s0 + $0x50] sm:$0xff]
  %v43 = vld [vmem:[%s0 + $0x58] sm:$0xff]
  %v44 = vld [vmem:[%s0 + $0x60] sm:$0xff]
  %v45 = vld [vmem:[%s0 + $0x68] sm:$0xff]
  %v46 = vld [vmem:[%s0 + $0x70] sm:$0xff]
  %v47 = vld [vmem:[%s0 + $0x78] sm:$0xff]
  %v48 = vld [vmem:[%s0 + $0x80] sm:$0xff]
  %v49 = vld [vmem:[%s0 + $0x88] sm:$0xff]
  %v50 = vld [vmem:[%s0 + $0x90] sm:$0xff]
  %v51 = vld [vmem:[%s0 + $0x98] sm:$0xff]
  %v52 = vld [vmem:[%s0 + $0xa0] sm:$0xff]
  %v53 = vld [vmem:[%s0 + $0xa8] sm:$0xff]
  %v54 = vld [vmem:[%s0 + $0xb0] sm:$0xff]
  %v55 = vld [vmem:[%s0 + $0xb8] sm:$0xff]
  %v56 = vld [vmem:[%s0 + $0xc0] sm:$0xff]
  %v57 = vld [vmem:[%s0 + $0xc8] sm:$0xff]
  %v58 = vld [vmem:[%s0 + $0xd0] sm:$0xff]
  %v59 = vld [vmem:[%s0 + $0xd8] sm:$0xff]
  %v60 = vld [vmem:[%s0 + $0xe0] sm:$0xff]
  %v61 = vld [vmem:[%s0 + $0xe8] sm:$0xff]
  %v62 = vld [vmem:[%s0 + $0xf0] sm:$0xff]
  %v63 = vld [vmem:[%s0 + $0xf8] sm:$0xff]
  %v64 = vld [vmem:[%s0 + $0x100] sm:$0xff]
  %v65 = vld [vmem:[%s0 + $0x108] sm:$0xff]
  %v66 = vld [vmem:[%s0 + $0x110] sm:$0xff]
  %v67 = vld [vmem:[%s0 + $0x118] sm:$0xff]
  %v68 = vld [vmem:[%s0 + $0x120] sm:$0xff]
  %v69 = vld [vmem:[%s0 + $0x128] sm:$0xff]
  %v70 = vld [vmem:[%s0 + $0x130] sm:$0xff]
  %v71 = vld [vmem:[%s0 + $0x138] sm:$0xff]
  %v72 = vld [vmem:[%s0 + $0x140] sm:$0xff]
  %v73 = vld [vmem:[%s0 + $0x148] sm:$0xff]
  %v74 = vld [vmem:[%s0 + $0x150] sm:$0xff]
  %v75 = vld [vmem:[%s0 + $0x158] sm:$0xff]
  %v76 = vld [vmem:[%s0 + $0x160] sm:$0xff]
  %v77 = vld [vmem:[%s0 + $0x168] sm:$0xff]
  %v78 = vld [vmem:[%s0 + $0x170] sm:$0xff]
  %v79 = vld [vmem:[%s0 + $0x178] sm:$0xff]
  %v80 = vld [vmem:[%s0 + $0x180] sm:$0xff]
  %v81 = vld [vmem:[%s0 + $0x188] sm:$0xff]
  %v82 = vld [vmem:[%s0 + $0x190] sm:$0xff]
  %v83 = vld [vmem:[%s0 + $0x198] sm:$0xff]
  %v84 = vld [vmem:[%s0 + $0x1a0] sm:$0xff]
  %v85 = vld [vmem:[%s0 + $0x1a8] sm:$0xff]
  %v86 = vld [vmem:[%s0 + $0x1b0] sm:$0xff]
  %v87 = vld [vmem:[%s0 + $0x1b8] sm:$0xff]
  %v88 = vld [vmem:[%s0 + $0x1c0] sm:$0xff]
  %v89 = vld [vmem:[%s0 + $0x1c8] sm:$0xff]
  %v90 = vld [vmem:[%s0 + $0x1d0] sm:$0xff]
  %v91 = vld [vmem:[%s0 + $0x1d8] sm:$0xff]
  %v92 = vld [vmem:[%s0 + $0x1e0] sm:$0xff]
  %v93 = vld [vmem:[%s0 + $0x1e8] sm:$0xff]
  %v94 = vld [vmem:[%s0 + $0x1f0] sm:$0xff]
  %v95 = vld [vmem:[%s0 + $0x1f8] sm:$0xff]
  %v96 = vld [vmem:[%s0 + $0x200] sm:$0xff]
  %v97 = vld [vmem:[%s0 + $0x208] sm:$0xff]
  %v98 = vld [vmem:[%s0 + $0x210] sm:$0xff]
  %v99 = vld [vmem:[%s0 + $0x218] sm:$0xff]
  %v100 = vld [vmem:[%s0 + $0x220] sm:$0xff]
  %v101 = vld [vmem:[%s0 + $0x228] sm:$0xff]
  %v102 = vld [vmem:[%s0 + $0x230] sm:$0xff]
  %v103 = vld [vmem:[%s0 + $0x238] sm:$0xff]
  %v104 = vld [vmem:[%s0 + $0x240] sm:$0xff]
  %v105 = vld [vmem:[%s0 + $0x248] sm:$0xff]
  %v106 = vld [vmem:[%s0 + $0x250] sm:$0xff]
  %v107 = vld [vmem:[%s0 + $0x258] sm:$0xff]
  %v108 = vld [vmem:[%s0 + $0x260] sm:$0xff]
  %v109 = vld [vmem:[%s0 + $0x268] sm:$0xff]
  %v110 = vld [vmem:[%s0 + $0x270] sm:$0xff]
  %v111 = vld [vmem:[%s0 + $0x278] sm:$0xff]
  %v112 = vld [vmem:[%s0 + $0x280] sm:$0xff]
  %v113 = vld [vmem:[%s0 + $0x288] sm:$0xff]
  %v114 = vld [vmem:[%s0 + $0x290] sm:$0xff]
  %v115 = vld [vmem:[%s0 + $0x298] sm:$0xff]
  %v116 = vld [vmem:[%s0 + $0x2a0] sm:$0xff]
  %v117 = vld [vmem:[%s0 + $0x2a8] sm:$0xff]
  %v118 = vld [vmem:[%s0 + $0x2b0] sm:$0xff]
  %v119 = vld [vmem:[%s0 + $0x2b8] sm:$0xff]
  %v120 = vld [vmem:[%s1] sm:$0xff]
  %v121 = vld [vmem:[%s1 + $0x8] sm:$0xff]
  %v122 = vld [vmem:[%s1 + $0x10] sm:$0xff]
  %v123 = vld [vmem:[%s1 + $0x18] sm:$0xff]
  %v124 = vld [vmem:[%s1 + $0x20] sm:$0xff]
  %v125 = vld [vmem:[%s1 + $0x28] sm:$0xff]
  %v126 = vld [vmem:[%s1 + $0x30] sm:$0xff]
  %v127 = vld [vmem:[%s1 + $0x38] sm:$0xff]
  %v128 = vld [vmem:[%s1 + $0x40] sm:$0xff]
  %v129 = vld [vmem:[%s1 + $0x48] sm:$0xff]
  %v130 = vld [vmem:[%s1 + $0x50] sm:$0xff]
  %v131 = vld [vmem:[%s1 + $0x58] sm:$0xff]
  %v132 = vld [vmem:[%s1 + $0x60] sm:$0xff]
  %v133 = vld [vmem:[%s1 + $0x68] sm:$0xff]
  %v134 = vld [vmem:[%s1 + $0x70] sm:$0xff]
  %v135 = vld [vmem:[%s1 + $0x78] sm:$0xff]
  %v136 = vld [vmem:[%s1 + $0x80] sm:$0xff]
  %v137 = vld [vmem:[%s1 + $0x88] sm:$0xff]
  %v138 = vld [vmem:[%s1 + $0x90] sm:$0xff]
  %v139 = vld [vmem:[%s1 + $0x98] sm:$0xff]
  %v140 = vld [vmem:[%s1 + $0xa0] sm:$0xff]
  %v141 = vld [vmem:[%s1 + $0xa8] sm:$0xff]
  %v142 = vld [vmem:[%s1 + $0xb0] sm:$0xff]
  %v143 = vld [vmem:[%s1 + $0xb8] sm:$0xff]
  %v144 = vld [vmem:[%s1 + $0xc0] sm:$0xff]
  %v145 = vld [vmem:[%s1 + $0xc8] sm:$0xff]
  %v146 = vld [vmem:[%s1 + $0xd0] sm:$0xff]
  %v147 = vld [vmem:[%s1 + $0xd8] sm:$0xff]
  %v148 = vld [vmem:[%s1 + $0xe0] sm:$0xff]
  %v149 = vld [vmem:[%s1 + $0xe8] sm:$0xff]
  %v150 = vld [vmem:[%s1 + $0xf0] sm:$0xff]
  %v151 = vld [vmem:[%s1 + $0xf8] sm:$0xff]
  %v152 = vld [vmem:[%s2] sm:$0x1]
  %v154 = vlaneseq
  %v155 = vshrl.u32 %v154, 7
  %v156 = vsub.s32 0, %v155
  %v157 = vrot.slane %v152, %v156
  %159 = vmatprep.subr.mxu0 0.0
  %160 = vmatpush1.msra.mxu0 %v120
  %161 = vmatprep.subr.mxu0 0.0
  %162 = vmatpush1.msra.mxu0 %v121
  %163 = vmatprep.subr.mxu0 0.0
  %164 = vmatpush1.msra.mxu0 %v122
  %165 = vmatprep.subr.mxu0 0.0
  %166 = vmatpush1.msra.mxu0 %v123
  %167 = vmatprep.subr.mxu0 0.0
  %168 = vmatpush1.msra.mxu0 %v124
  %169 = vmatprep.subr.mxu0 0.0
  %170 = vmatpush1.msra.mxu0 %v125
  %171 = vmatprep.subr.mxu0 0.0
  %172 = vmatpush1.msra.mxu0 %v126
  %173 = vmatprep.subr.mxu0 0.0
  %174 = vmatpush1.msra.mxu0 %v127
  %175 = vmatprep.subr.mxu0 0.0
  %176 = vmatpush1.msra.mxu0 %v128
  %177 = vmatprep.subr.mxu0 0.0
  %178 = vmatpush1.msra.mxu0 %v129
  %179 = vmatprep.subr.mxu0 0.0
  %180 = vmatpush1.msra.mxu0 %v130
  %181 = vmatprep.subr.mxu0 0.0
  %182 = vmatpush1.msra.mxu0 %v131
  %183 = vmatprep.subr.mxu0 0.0
  %184 = vmatpush1.msra.mxu0 %v132
  %185 = vmatprep.subr.mxu0 0.0
  %186 = vmatpush1.msra.mxu0 %v133
  %187 = vmatprep.subr.mxu0 0.0
  %188 = vmatpush1.msra.mxu0 %v134
  %189 = vmatprep.subr.mxu0 0.0
  %190 = vmatpush1.msra.mxu0 %v135
  %191 = vmatprep.subr.mxu0 0.0
  %192 = vmatpush1.msra.mxu0 %v136
  %193 = vmatprep.subr.mxu0 0.0
  %194 = vmatpush1.msra.mxu0 %v137
  %195 = vmatprep.subr.mxu0 0.0
  %196 = vmatpush1.msra.mxu0 %v138
  %197 = vmatprep.subr.mxu0 0.0
  %198 = vmatpush1.msra.mxu0 %v139
  %199 = vmatprep.subr.mxu0 0.0
  %200 = vmatpush1.msra.mxu0 %v140
  %201 = vmatprep.subr.mxu0 0.0
  %202 = vmatpush1.msra.mxu0 %v141
  %203 = vmatprep.subr.mxu0 0.0
  %204 = vmatpush1.msra.mxu0 %v142
  %205 = vmatprep.subr.mxu0 0.0
  %206 = vmatpush1.msra.mxu0 %v143
  %207 = vmatprep.subr.mxu0 0.0
  %208 = vmatpush1.msra.mxu0 %v144
  %209 = vmatprep.subr.mxu0 0.0
  %210 = vmatpush1.msra.mxu0 %v145
  %211 = vmatprep.subr.mxu0 0.0
  %212 = vmatpush1.msra.mxu0 %v146
  %213 = vmatprep.subr.mxu0 0.0
  %214 = vmatpush1.msra.mxu0 %v147
  %215 = vmatprep.subr.mxu0 0.0
  %216 = vmatpush1.msra.mxu0 %v148
  %217 = vmatprep.subr.mxu0 0.0
  %218 = vmatpush1.msra.mxu0 %v149
  %219 = vmatprep.subr.mxu0 0.0
  %220 = vmatpush1.msra.mxu0 %v150
  %221 = vmatprep.subr.mxu0 0.0
  %222 = vmatpush1.msra.mxu0 %v151
  %223 = vmatprep.mubr.f32.mxu0 %v33
  %224 = vmatmul.mubr.f32.gmra.mrb[0].mxu0 %v32
  %v225 = vpop.f32.mrb[0].mxu0
  %v226 = vadd.f32 %v157, %v225
  %v227 = vpop.f32.mrb[0].mxu0
  %228 = vmatprep.mubr.f32.mxu0 %v35
  %229 = vmatmul.mubr.f32.gmra.mrb[0].mxu0 %v34
  %v230 = vpop.f32.mrb[0].mxu0
  %v231 = vadd.f32 %v157, %v230
  %v232 = vpop.f32.mrb[0].mxu0
  %233 = vmatprep.mubr.f32.mxu0 %v37
  %234 = vmatmul.mubr.f32.gmra.mrb[0].mxu0 %v36
  %v235 = vpop.f32.mrb[0].mxu0
  %v236 = vadd.f32 %v157, %v235
  %v237 = vpop.f32.mrb[0].mxu0
  %238 = vmatprep.mubr.f32.mxu0 %v39
  %239 = vmatmul.mubr.f32.gmra.mrb[0].mxu0 %v38
  %v240 = vpop.f32.mrb[0].mxu0
  %v241 = vadd.f32 %v157, %v240
  %v242 = vpop.f32.mrb[0].mxu0
  %243 = vmatprep.mubr.f32.mxu0 %v41
  %244 = vmatmul.mubr.f32.gmra.mrb[0].mxu0 %v40
  %v245 = vpop.f32.mrb[0].mxu0
  %v246 = vadd.f32 %v157, %v245
  %v247 = vpop.f32.mrb[0].mxu0
  %248 = vmatprep.mubr.f32.mxu0 %v43
  %249 = vmatmul.mubr.f32.gmra.mrb[0].mxu0 %v42
  %v250 = vpop.f32.mrb[0].mxu0
  %v251 = vadd.f32 %v157, %v250
  %v252 = vpop.f32.mrb[0].mxu0
  %253 = vmatprep.mubr.f32.mxu0 %v45
  %254 = vmatmul.mubr.f32.gmra.mrb[0].mxu0 %v44
  %v255 = vpop.f32.mrb[0].mxu0
  %v256 = vadd.f32 %v157, %v255
  %v257 = vpop.f32.mrb[0].mxu0
  %258 = vmatprep.mubr.f32.mxu0 %v47
  %259 = vmatmul.mubr.f32.gmra.mrb[0].mxu0 %v46
  %v260 = vpop.f32.mrb[0].mxu0
  %v261 = vadd.f32 %v157, %v260
  %v262 = vpop.f32.mrb[0].mxu0
  %263 = vmatprep.mubr.f32.mxu0 %v49
  %264 = vmatmul.mubr.f32.gmra.mrb[0].mxu0 %v48
  %v265 = vpop.f32.mrb[0].mxu0
  %v266 = vadd.f32 %v157, %v265
  %v267 = vpop.f32.mrb[0].mxu0
  %268 = vmatprep.mubr.f32.mxu0 %v51
  %269 = vmatmul.mubr.f32.gmra.mrb[0].mxu0 %v50
  %v270 = vpop.f32.mrb[0].mxu0
  %v271 = vadd.f32 %v157, %v270
  %v272 = vpop.f32.mrb[0].mxu0
  %273 = vmatprep.mubr.f32.mxu0 %v53
  %274 = vmatmul.mubr.f32.gmra.mrb[0].mxu0 %v52
  %v275 = vpop.f32.mrb[0].mxu0
  %v276 = vadd.f32 %v157, %v275
  %v277 = vpop.f32.mrb[0].mxu0
  %278 = vmatprep.mubr.f32.mxu0 %v55
  %279 = vmatmul.mubr.f32.gmra.mrb[0].mxu0 %v54
  %v280 = vpop.f32.mrb[0].mxu0
  %v281 = vadd.f32 %v157, %v280
  %v282 = vpop.f32.mrb[0].mxu0
  %283 = vmatprep.mubr.f32.mxu0 %v57
  %284 = vmatmul.mubr.f32.gmra.mrb[0].mxu0 %v56
  %v285 = vpop.f32.mrb[0].mxu0
  %v286 = vadd.f32 %v157, %v285
  %v287 = vpop.f32.mrb[0].mxu0
  %288 = vmatprep.mubr.f32.mxu0 %v59
  %289 = vmatmul.mubr.f32.gmra.mrb[0].mxu0 %v58
  %v290 = vpop.f32.mrb[0].mxu0
  %v291 = vadd.f32 %v157, %v290
  %v292 = vpop.f32.mrb[0].mxu0
  %293 = vmatprep.mubr.f32.mxu0 %v61
  %294 = vmatmul.mubr.f32.gmra.mrb[0].mxu0 %v60
  %v295 = vpop.f32.mrb[0].mxu0
  %v296 = vadd.f32 %v157, %v295
  %v297 = vpop.f32.mrb[0].mxu0
  %298 = vmatprep.mubr.f32.mxu0 %v63
  %299 = vmatmul.mubr.f32.gmra.mrb[0].mxu0 %v62
  %v300 = vpop.f32.mrb[0].mxu0
  %v301 = vadd.f32 %v157, %v300
  %v302 = vpop.f32.mrb[0].mxu0
  %303 = vmatprep.mubr.f32.mxu0 %v65
  %304 = vmatmul.mubr.f32.gmra.mrb[0].mxu0 %v64
  %v305 = vpop.f32.mrb[0].mxu0
  %v306 = vadd.f32 %v157, %v305
  %v307 = vpop.f32.mrb[0].mxu0
  %308 = vmatprep.mubr.f32.mxu0 %v67
  %309 = vmatmul.mubr.f32.gmra.mrb[0].mxu0 %v66
  %v310 = vpop.f32.mrb[0].mxu0
  %v311 = vadd.f32 %v157, %v310
  %v312 = vpop.f32.mrb[0].mxu0
  %313 = vmatprep.mubr.f32.mxu0 %v69
  %314 = vmatmul.mubr.f32.gmra.mrb[0].mxu0 %v68
  %v315 = vpop.f32.mrb[0].mxu0
  %v316 = vadd.f32 %v157, %v315
  %v317 = vpop.f32.mrb[0].mxu0
  %318 = vmatprep.mubr.f32.mxu0 %v71
  %319 = vmatmul.mubr.f32.gmra.mrb[0].mxu0 %v70
  %v320 = vpop.f32.mrb[0].mxu0
  %v321 = vadd.f32 %v157, %v320
  %v322 = vpop.f32.mrb[0].mxu0
  %323 = vmatprep.mubr.f32.mxu0 %v73
  %324 = vmatmul.mubr.f32.gmra.mrb[0].mxu0 %v72
  %v325 = vpop.f32.mrb[0].mxu0
  %v326 = vadd.f32 %v157, %v325
  %v327 = vpop.f32.mrb[0].mxu0
  %328 = vmatprep.mubr.f32.mxu0 %v75
  %329 = vmatmul.mubr.f32.gmra.mrb[0].mxu0 %v74
  %v330 = vpop.f32.mrb[0].mxu0
  %v331 = vadd.f32 %v157, %v330
  %v332 = vpop.f32.mrb[0].mxu0
  %333 = vmatprep.mubr.f32.mxu0 %v77
  %334 = vmatmul.mubr.f32.gmra.mrb[0].mxu0 %v76
  %v335 = vpop.f32.mrb[0].mxu0
  %v336 = vadd.f32 %v157, %v335
  %v337 = vpop.f32.mrb[0].mxu0
  %338 = vmatprep.mubr.f32.mxu0 %v79
  %339 = vmatmul.mubr.f32.gmra.mrb[0].mxu0 %v78
  %v340 = vpop.f32.mrb[0].mxu0
  %v341 = vadd.f32 %v157, %v340
  %v342 = vpop.f32.mrb[0].mxu0
  %343 = vmatprep.mubr.f32.mxu0 %v81
  %344 = vmatmul.mubr.f32.gmra.mrb[0].mxu0 %v80
  %v345 = vpop.f32.mrb[0].mxu0
  %v346 = vadd.f32 %v157, %v345
  %v347 = vpop.f32.mrb[0].mxu0
  %348 = vmatprep.mubr.f32.mxu0 %v83
  %349 = vmatmul.mubr.f32.gmra.mrb[0].mxu0 %v82
  %v350 = vpop.f32.mrb[0].mxu0
  %v351 = vadd.f32 %v157, %v350
  %v352 = vpop.f32.mrb[0].mxu0
  %353 = vmatprep.mubr.f32.mxu0 %v85
  %354 = vmatmul.mubr.f32.gmra.mrb[0].mxu0 %v84
  %v355 = vpop.f32.mrb[0].mxu0
  %v356 = vadd.f32 %v157, %v355
  %v357 = vpop.f32.mrb[0].mxu0
  %358 = vmatprep.mubr.f32.mxu0 %v87
  %359 = vmatmul.mubr.f32.gmra.mrb[0].mxu0 %v86
  %v360 = vpop.f32.mrb[0].mxu0
  %v361 = vadd.f32 %v157, %v360
  %v362 = vpop.f32.mrb[0].mxu0
  %363 = vmatprep.mubr.f32.mxu0 %v89
  %364 = vmatmul.mubr.f32.gmra.mrb[0].mxu0 %v88
  %v365 = vpop.f32.mrb[0].mxu0
  %v366 = vadd.f32 %v157, %v365
  %v367 = vpop.f32.mrb[0].mxu0
  %368 = vmatprep.mubr.f32.mxu0 %v91
  %369 = vmatmul.mubr.f32.gmra.mrb[0].mxu0 %v90
  %v370 = vpop.f32.mrb[0].mxu0
  %v371 = vadd.f32 %v157, %v370
  %v372 = vpop.f32.mrb[0].mxu0
  %373 = vmatprep.mubr.f32.mxu0 %v93
  %374 = vmatmul.mubr.f32.gmra.mrb[0].mxu0 %v92
  %v375 = vpop.f32.mrb[0].mxu0
  %v376 = vadd.f32 %v157, %v375
  %v377 = vpop.f32.mrb[0].mxu0
  %378 = vmatprep.mubr.f32.mxu0 %v95
  %379 = vmatmul.mubr.f32.gmra.mrb[0].mxu0 %v94
  %v380 = vpop.f32.mrb[0].mxu0
  %v381 = vadd.f32 %v157, %v380
  %v382 = vpop.f32.mrb[0].mxu0
  %383 = vmatprep.mubr.f32.mxu0 %v97
  %384 = vmatmul.mubr.f32.gmra.mrb[0].mxu0 %v96
  %v385 = vpop.f32.mrb[0].mxu0
  %v386 = vadd.f32 %v157, %v385
  %v387 = vpop.f32.mrb[0].mxu0
  %388 = vmatprep.mubr.f32.mxu0 %v99
  %389 = vmatmul.mubr.f32.gmra.mrb[0].mxu0 %v98
  %v390 = vpop.f32.mrb[0].mxu0
  %v391 = vadd.f32 %v157, %v390
  %v392 = vpop.f32.mrb[0].mxu0
  %393 = vmatprep.mubr.f32.mxu0 %v101
  %394 = vmatmul.mubr.f32.gmra.mrb[0].mxu0 %v100
  %v395 = vpop.f32.mrb[0].mxu0
  %v396 = vadd.f32 %v157, %v395
  %v397 = vpop.f32.mrb[0].mxu0
  %398 = vmatprep.mubr.f32.mxu0 %v103
  %399 = vmatmul.mubr.f32.gmra.mrb[0].mxu0 %v102
  %v400 = vpop.f32.mrb[0].mxu0
  %v401 = vadd.f32 %v157, %v400
  %v402 = vpop.f32.mrb[0].mxu0
  %403 = vmatprep.mubr.f32.mxu0 %v105
  %404 = vmatmul.mubr.f32.gmra.mrb[0].mxu0 %v104
  %v405 = vpop.f32.mrb[0].mxu0
  %v406 = vadd.f32 %v157, %v405
  %v407 = vpop.f32.mrb[0].mxu0
  %408 = vmatprep.mubr.f32.mxu0 %v107
  %409 = vmatmul.mubr.f32.gmra.mrb[0].mxu0 %v106
  %v410 = vpop.f32.mrb[0].mxu0
  %v411 = vadd.f32 %v157, %v410
  %v412 = vpop.f32.mrb[0].mxu0
  %413 = vmatprep.mubr.f32.mxu0 %v109
  %414 = vmatmul.mubr.f32.gmra.mrb[0].mxu0 %v108
  %v415 = vpop.f32.mrb[0].mxu0
  %v416 = vadd.f32 %v157, %v415
  %v417 = vpop.f32.mrb[0].mxu0
  %418 = vmatprep.mubr.f32.mxu0 %v111
  %419 = vmatmul.mubr.f32.gmra.mrb[0].mxu0 %v110
  %v420 = vpop.f32.mrb[0].mxu0
  %v421 = vadd.f32 %v157, %v420
  %v422 = vpop.f32.mrb[0].mxu0
  %423 = vmatprep.mubr.f32.mxu0 %v113
  %424 = vmatmul.mubr.f32.gmra.mrb[0].mxu0 %v112
  %v425 = vpop.f32.mrb[0].mxu0
  %v426 = vadd.f32 %v157, %v425
  %v427 = vpop.f32.mrb[0].mxu0
  %428 = vmatprep.mubr.f32.mxu0 %v115
  %429 = vmatmul.mubr.f32.gmra.mrb[0].mxu0 %v114
  %v430 = vpop.f32.mrb[0].mxu0
  %v431 = vadd.f32 %v157, %v430
  %v432 = vpop.f32.mrb[0].mxu0
  %433 = vmatprep.mubr.f32.mxu0 %v117
  %434 = vmatmul.mubr.f32.gmra.mrb[0].mxu0 %v116
  %v435 = vpop.f32.mrb[0].mxu0
  %v436 = vadd.f32 %v157, %v435
  %v437 = vpop.f32.mrb[0].mxu0
  %438 = vmatprep.mubr.f32.mxu0 %v119
  %439 = vmatmul.mubr.f32.gmra.mrb[0].mxu0 %v118
  %v440 = vpop.f32.mrb[0].mxu0
  %v441 = vadd.f32 %v157, %v440
  %v442 = vpop.f32.mrb[0].mxu0
  %443 = vdwg.mxu0
  %v444 = vmax.f32 %v226, 0.0
  %v445 = vmax.f32 %v231, 0.0
  %v446 = vmax.f32 %v236, 0.0
  %v447 = vmax.f32 %v241, 0.0
  %v448 = vmax.f32 %v246, 0.0
  %v449 = vmax.f32 %v251, 0.0
  %v450 = vmax.f32 %v256, 0.0
  %v451 = vmax.f32 %v261, 0.0
  %v452 = vmax.f32 %v266, 0.0
  %v453 = vmax.f32 %v271, 0.0
  %v454 = vmax.f32 %v276, 0.0
  %v455 = vmax.f32 %v281, 0.0
  %v456 = vmax.f32 %v286, 0.0
  %v457 = vmax.f32 %v291, 0.0
  %v458 = vmax.f32 %v296, 0.0
  %v459 = vmax.f32 %v301, 0.0
  %v460 = vmax.f32 %v306, 0.0
  %v461 = vmax.f32 %v311, 0.0
  %v462 = vmax.f32 %v316, 0.0
  %v463 = vmax.f32 %v321, 0.0
  %v464 = vmax.f32 %v326, 0.0
  %v465 = vmax.f32 %v331, 0.0
  %v466 = vmax.f32 %v336, 0.0
  %v467 = vmax.f32 %v341, 0.0
  %v468 = vmax.f32 %v346, 0.0
  %v469 = vmax.f32 %v351, 0.0
  %v470 = vmax.f32 %v356, 0.0
  %v471 = vmax.f32 %v361, 0.0
  %v472 = vmax.f32 %v366, 0.0
  %v473 = vmax.f32 %v371, 0.0
  %v474 = vmax.f32 %v376, 0.0
  %v475 = vmax.f32 %v381, 0.0
  %v476 = vmax.f32 %v386, 0.0
  %v477 = vmax.f32 %v391, 0.0
  %v478 = vmax.f32 %v396, 0.0
  %v479 = vmax.f32 %v401, 0.0
  %v480 = vmax.f32 %v406, 0.0
  %v481 = vmax.f32 %v411, 0.0
  %v482 = vmax.f32 %v416, 0.0
  %v483 = vmax.f32 %v421, 0.0
  %v484 = vmax.f32 %v426, 0.0
  %v485 = vmax.f32 %v431, 0.0
  %v486 = vmax.f32 %v436, 0.0
  %v487 = vmax.f32 %v441, 0.0
  %vm488 = vcmask 130048
  %489 = vst.msk [vmem:[#allocation2] sm:$0xff] %vm488, %v444
  %490 = vst.msk [vmem:[#allocation2 + $0x8] sm:$0xff] %vm488, %v445
  %491 = vst.msk [vmem:[#allocation2 + $0x10] sm:$0xff] %vm488, %v446
  %492 = vst.msk [vmem:[#allocation2 + $0x18] sm:$0xff] %vm488, %v447
  %493 = vst.msk [vmem:[#allocation2 + $0x20] sm:$0xff] %vm488, %v448
  %494 = vst.msk [vmem:[#allocation2 + $0x28] sm:$0xff] %vm488, %v449
  %495 = vst.msk [vmem:[#allocation2 + $0x30] sm:$0xff] %vm488, %v450
  %496 = vst.msk [vmem:[#allocation2 + $0x38] sm:$0xff] %vm488, %v451
  %497 = vst.msk [vmem:[#allocation2 + $0x40] sm:$0xff] %vm488, %v452
  %498 = vst.msk [vmem:[#allocation2 + $0x48] sm:$0xff] %vm488, %v453
  %499 = vst.msk [vmem:[#allocation2 + $0x50] sm:$0xff] %vm488, %v454
  %500 = vst.msk [vmem:[#allocation2 + $0x58] sm:$0xff] %vm488, %v455
  %501 = vst.msk [vmem:[#allocation2 + $0x60] sm:$0xff] %vm488, %v456
  %502 = vst.msk [vmem:[#allocation2 + $0x68] sm:$0xff] %vm488, %v457
  %503 = vst.msk [vmem:[#allocation2 + $0x70] sm:$0xff] %vm488, %v458
  %504 = vst.msk [vmem:[#allocation2 + $0x78] sm:$0xff] %vm488, %v459
  %505 = vst.msk [vmem:[#allocation2 + $0x80] sm:$0xff] %vm488, %v460
  %506 = vst.msk [vmem:[#allocation2 + $0x88] sm:$0xff] %vm488, %v461
  %507 = vst.msk [vmem:[#allocation2 + $0x90] sm:$0xff] %vm488, %v462
  %508 = vst.msk [vmem:[#allocation2 + $0x98] sm:$0xff] %vm488, %v463
  %509 = vst.msk [vmem:[#allocation2 + $0xa0] sm:$0xff] %vm488, %v464
  %510 = vst.msk [vmem:[#allocation2 + $0xa8] sm:$0xff] %vm488, %v465
  %511 = vst.msk [vmem:[#allocation2 + $0xb0] sm:$0xff] %vm488, %v466
  %512 = vst.msk [vmem:[#allocation2 + $0xb8] sm:$0xff] %vm488, %v467
  %513 = vst.msk [vmem:[#allocation2 + $0xc0] sm:$0xff] %vm488, %v468
  %514 = vst.msk [vmem:[#allocation2 + $0xc8] sm:$0xff] %vm488, %v469
  %515 = vst.msk [vmem:[#allocation2 + $0xd0] sm:$0xff] %vm488, %v470
  %516 = vst.msk [vmem:[#allocation2 + $0xd8] sm:$0xff] %vm488, %v471
  %517 = vst.msk [vmem:[#allocation2 + $0xe0] sm:$0xff] %vm488, %v472
  %518 = vst.msk [vmem:[#allocation2 + $0xe8] sm:$0xff] %vm488, %v473
  %519 = vst.msk [vmem:[#allocation2 + $0xf0] sm:$0xff] %vm488, %v474
  %520 = vst.msk [vmem:[#allocation2 + $0xf8] sm:$0xff] %vm488, %v475
  %521 = vst.msk [vmem:[#allocation2 + $0x100] sm:$0xff] %vm488, %v476
  %522 = vst.msk [vmem:[#allocation2 + $0x108] sm:$0xff] %vm488, %v477
  %523 = vst.msk [vmem:[#allocation2 + $0x110] sm:$0xff] %vm488, %v478
  %524 = vst.msk [vmem:[#allocation2 + $0x118] sm:$0xff] %vm488, %v479
  %525 = vst.msk [vmem:[#allocation2 + $0x120] sm:$0xff] %vm488, %v480
  %526 = vst.msk [vmem:[#allocation2 + $0x128] sm:$0xff] %vm488, %v481
  %527 = vst.msk [vmem:[#allocation2 + $0x130] sm:$0xff] %vm488, %v482
  %528 = vst.msk [vmem:[#allocation2 + $0x138] sm:$0xff] %vm488, %v483
  %529 = vst.msk [vmem:[#allocation2 + $0x140] sm:$0xff] %vm488, %v484
  %530 = vst.msk [vmem:[#allocation2 + $0x148] sm:$0xff] %vm488, %v485
  %531 = vst.msk [vmem:[#allocation2 + $0x150] sm:$0xff] %vm488, %v486
  %532 = vst.msk [vmem:[#allocation2 + $0x158] sm:$0xff] %vm488, %v487
  %v533 = vld [vmem:[#allocation2] sm:$0xff]
  %v534 = vld [vmem:[#allocation2 + $0x8] sm:$0xff]
  %v535 = vld [vmem:[#allocation2 + $0x10] sm:$0xff]
  %v536 = vld [vmem:[#allocation2 + $0x18] sm:$0xff]
  %v537 = vld [vmem:[#allocation2 + $0x1] sm:$0xff]
  %v538 = vld [vmem:[#allocation2 + $0x9] sm:$0xff]
  %v539 = vld [vmem:[#allocation2 + $0x11] sm:$0xff]
  %v540 = vld [vmem:[#allocation2 + $0x19] sm:$0xff]
  %v541 = vld [vmem:[#allocation2 + $0x2] sm:$0xff]
  %v542 = vld [vmem:[#allocation2 + $0xa] sm:$0xff]
  %v543 = vld [vmem:[#allocation2 + $0x12] sm:$0xff]
  %v544 = vld [vmem:[#allocation2 + $0x1a] sm:$0xff]
  %v545 = vld [vmem:[#allocation2 + $0x3] sm:$0xff]
  %v546 = vld [vmem:[#allocation2 + $0xb] sm:$0xff]
  %v547 = vld [vmem:[#allocation2 + $0x13] sm:$0xff]
  %v548 = vld [vmem:[#allocation2 + $0x1b] sm:$0xff]
  %v549 = vld [vmem:[#allocation2 + $0x23] sm:$0xff]
  %v550 = vld [vmem:[#allocation2 + $0x2b] sm:$0xff]
  %v551 = vld [vmem:[#allocation2 + $0x33] sm:$0xff]
  %v552 = vld [vmem:[#allocation2 + $0x3b] sm:$0xff]
  %v553 = vld [vmem:[#allocation2 + $0x24] sm:$0xff]
  %v554 = vld [vmem:[#allocation2 + $0x2c] sm:$0xff]
  %v555 = vld [vmem:[#allocation2 + $0x34] sm:$0xff]
  %v556 = vld [vmem:[#allocation2 + $0x3c] sm:$0xff]
  %v557 = vld [vmem:[#allocation2 + $0x25] sm:$0xff]
  %v558 = vld [vmem:[#allocation2 + $0x2d] sm:$0xff]
  %v559 = vld [vmem:[#allocation2 + $0x35] sm:$0xff]
  %v560 = vld [vmem:[#allocation2 + $0x3d] sm:$0xff]
  %v561 = vld [vmem:[#allocation2 + $0x26] sm:$0xff]
  %v562 = vld [vmem:[#allocation2 + $0x2e] sm:$0xff]
  %v563 = vld [vmem:[#allocation2 + $0x36] sm:$0xff]
  %v564 = vld [vmem:[#allocation2 + $0x3e] sm:$0xff]
  %v565 = vld [vmem:[#allocation2 + $0x46] sm:$0xff]
  %v566 = vld [vmem:[#allocation2 + $0x4e] sm:$0xff]
  %v567 = vld [vmem:[#allocation2 + $0x56] sm:$0xff]
  %v568 = vld [vmem:[#allocation2 + $0x5e] sm:$0xff]
  %v569 = vld [vmem:[#allocation2 + $0x47] sm:$0xff]
  %v570 = vld [vmem:[#allocation2 + $0x4f] sm:$0xff]
  %v571 = vld [vmem:[#allocation2 + $0x57] sm:$0xff]
  %v572 = vld [vmem:[#allocation2 + $0x5f] sm:$0xff]
  %v573 = vld [vmem:[#allocation2 + $0x48] sm:$0xff]
  %v574 = vld [vmem:[#allocation2 + $0x50] sm:$0xff]
  %v575 = vld [vmem:[#allocation2 + $0x58] sm:$0xff]
  %v576 = vld [vmem:[#allocation2 + $0x60] sm:$0xff]
  %v577 = vld [vmem:[#allocation2 + $0x49] sm:$0xff]
  %v578 = vld [vmem:[#allocation2 + $0x51] sm:$0xff]
  %v579 = vld [vmem:[#allocation2 + $0x59] sm:$0xff]
  %v580 = vld [vmem:[#allocation2 + $0x61] sm:$0xff]
  %v581 = vld [vmem:[#allocation2 + $0x69] sm:$0xff]
  %v582 = vld [vmem:[#allocation2 + $0x71] sm:$0xff]
  %v583 = vld [vmem:[#allocation2 + $0x79] sm:$0xff]
  %v584 = vld [vmem:[#allocation2 + $0x81] sm:$0xff]
  %v585 = vld [vmem:[#allocation2 + $0x6a] sm:$0xff]
  %v586 = vld [vmem:[#allocation2 + $0x72] sm:$0xff]
  %v587 = vld [vmem:[#allocation2 + $0x7a] sm:$0xff]
  %v588 = vld [vmem:[#allocation2 + $0x82] sm:$0xff]
  %v589 = vld [vmem:[#allocation2 + $0x6b] sm:$0xff]
  %v590 = vld [vmem:[#allocation2 + $0x73] sm:$0xff]
  %v591 = vld [vmem:[#allocation2 + $0x7b] sm:$0xff]
  %v592 = vld [vmem:[#allocation2 + $0x83] sm:$0xff]
  %v593 = vld [vmem:[#allocation2 + $0x6c] sm:$0xff]
  %v594 = vld [vmem:[#allocation2 + $0x74] sm:$0xff]
  %v595 = vld [vmem:[#allocation2 + $0x7c] sm:$0xff]
  %v596 = vld [vmem:[#allocation2 + $0x84] sm:$0xff]
  %601 = vrot.lane.b32.xlu0 %v537, 16
  %v602 = vpop.permute.xlu0 %601
  %603 = vrot.lane.b32.xlu0 %v538, 16
  %v604 = vpop.permute.xlu0 %603
  %605 = vrot.lane.b32.xlu0 %v539, 16
  %v606 = vpop.permute.xlu0 %605
  %607 = vrot.lane.b32.xlu0 %v540, 16
  %v608 = vpop.permute.xlu0 %607
  %617 = vrot.lane.b32.xlu0 %v541, 32
  %v618 = vpop.permute.xlu0 %617
  %619 = vrot.lane.b32.xlu0 %v542, 32
  %v620 = vpop.permute.xlu0 %619
  %621 = vrot.lane.b32.xlu0 %v543, 32
  %v622 = vpop.permute.xlu0 %621
  %623 = vrot.lane.b32.xlu0 %v544, 32
  %v624 = vpop.permute.xlu0 %623
  %633 = vrot.lane.b32.xlu0 %v545, 48
  %v634 = vpop.permute.xlu0 %633
  %635 = vrot.lane.b32.xlu0 %v546, 48
  %v636 = vpop.permute.xlu0 %635
  %637 = vrot.lane.b32.xlu0 %v547, 48
  %v638 = vpop.permute.xlu0 %637
  %639 = vrot.lane.b32.xlu0 %v548, 48
  %v640 = vpop.permute.xlu0 %639
  %649 = vrot.lane.b32.xlu0 %v549, 64
  %v650 = vpop.permute.xlu0 %649
  %651 = vrot.lane.b32.xlu0 %v550, 64
  %v652 = vpop.permute.xlu0 %651
  %653 = vrot.lane.b32.xlu0 %v551, 64
  %v654 = vpop.permute.xlu0 %653
  %655 = vrot.lane.b32.xlu0 %v552, 64
  %v656 = vpop.permute.xlu0 %655
  %665 = vrot.lane.b32.xlu0 %v553, 80
  %v666 = vpop.permute.xlu0 %665
  %667 = vrot.lane.b32.xlu0 %v554, 80
  %v668 = vpop.permute.xlu0 %667
  %669 = vrot.lane.b32.xlu0 %v555, 80
  %v670 = vpop.permute.xlu0 %669
  %671 = vrot.lane.b32.xlu0 %v556, 80
  %v672 = vpop.permute.xlu0 %671
  %681 = vrot.lane.b32.xlu0 %v557, 96
  %v682 = vpop.permute.xlu0 %681
  %683 = vrot.lane.b32.xlu0 %v558, 96
  %v684 = vpop.permute.xlu0 %683
  %685 = vrot.lane.b32.xlu0 %v559, 96
  %v686 = vpop.permute.xlu0 %685
  %687 = vrot.lane.b32.xlu0 %v560, 96
  %v688 = vpop.permute.xlu0 %687
  %697 = vrot.lane.b32.xlu0 %v561, 112
  %v698 = vpop.permute.xlu0 %697
  %699 = vrot.lane.b32.xlu0 %v562, 112
  %v700 = vpop.permute.xlu0 %699
  %701 = vrot.lane.b32.xlu0 %v563, 112
  %v702 = vpop.permute.xlu0 %701
  %703 = vrot.lane.b32.xlu0 %v564, 112
  %v704 = vpop.permute.xlu0 %703
  %713 = vrot.lane.b32.xlu0 %v569, 16
  %v714 = vpop.permute.xlu0 %713
  %715 = vrot.lane.b32.xlu0 %v570, 16
  %v716 = vpop.permute.xlu0 %715
  %717 = vrot.lane.b32.xlu0 %v571, 16
  %v718 = vpop.permute.xlu0 %717
  %719 = vrot.lane.b32.xlu0 %v572, 16
  %v720 = vpop.permute.xlu0 %719
  %729 = vrot.lane.b32.xlu0 %v573, 32
  %v730 = vpop.permute.xlu0 %729
  %731 = vrot.lane.b32.xlu0 %v574, 32
  %v732 = vpop.permute.xlu0 %731
  %733 = vrot.lane.b32.xlu0 %v575, 32
  %v734 = vpop.permute.xlu0 %733
  %735 = vrot.lane.b32.xlu0 %v576, 32
  %v736 = vpop.permute.xlu0 %735
  %745 = vrot.lane.b32.xlu0 %v577, 48
  %v746 = vpop.permute.xlu0 %745
  %747 = vrot.lane.b32.xlu0 %v578, 48
  %v748 = vpop.permute.xlu0 %747
  %749 = vrot.lane.b32.xlu0 %v579, 48
  %v750 = vpop.permute.xlu0 %749
  %751 = vrot.lane.b32.xlu0 %v580, 48
  %v752 = vpop.permute.xlu0 %751
  %761 = vrot.lane.b32.xlu0 %v581, 64
  %v762 = vpop.permute.xlu0 %761
  %763 = vrot.lane.b32.xlu0 %v582, 64
  %v764 = vpop.permute.xlu0 %763
  %765 = vrot.lane.b32.xlu0 %v583, 64
  %v766 = vpop.permute.xlu0 %765
  %767 = vrot.lane.b32.xlu0 %v584, 64
  %v768 = vpop.permute.xlu0 %767
  %777 = vrot.lane.b32.xlu0 %v585, 80
  %v778 = vpop.permute.xlu0 %777
  %779 = vrot.lane.b32.xlu0 %v586, 80
  %v780 = vpop.permute.xlu0 %779
  %781 = vrot.lane.b32.xlu0 %v587, 80
  %v782 = vpop.permute.xlu0 %781
  %783 = vrot.lane.b32.xlu0 %v588, 80
  %v784 = vpop.permute.xlu0 %783
  %793 = vrot.lane.b32.xlu0 %v589, 96
  %v794 = vpop.permute.xlu0 %793
  %795 = vrot.lane.b32.xlu0 %v590, 96
  %v796 = vpop.permute.xlu0 %795
  %797 = vrot.lane.b32.xlu0 %v591, 96
  %v798 = vpop.permute.xlu0 %797
  %799 = vrot.lane.b32.xlu0 %v592, 96
  %v800 = vpop.permute.xlu0 %799
  %809 = vrot.lane.b32.xlu0 %v593, 112
  %v810 = vpop.permute.xlu0 %809
  %811 = vrot.lane.b32.xlu0 %v594, 112
  %v812 = vpop.permute.xlu0 %811
  %813 = vrot.lane.b32.xlu0 %v595, 112
  %v814 = vpop.permute.xlu0 %813
  %815 = vrot.lane.b32.xlu0 %v596, 112
  %v816 = vpop.permute.xlu0 %815
  %v821 = vsel %vm488, %v533, %v602
  %v822 = vsel %vm488, %v534, %v604
  %v823 = vsel %vm488, %v535, %v606
  %v824 = vsel %vm488, %v536, %v608
  %vm825 = vcmask 261120
  %v826 = vsel %vm825, %v821, %v618
  %v827 = vsel %vm825, %v822, %v620
  %v828 = vsel %vm825, %v823, %v622
  %v829 = vsel %vm825, %v824, %v624
  %vm830 = vcmask 392192
  %v831 = vsel %vm830, %v826, %v634
  %v832 = vsel %vm830, %v827, %v636
  %v833 = vsel %vm830, %v828, %v638
  %v834 = vsel %vm830, %v829, %v640
  %vm835 = vcmask 523264
  %v836 = vsel %vm835, %v831, %v650
  %v837 = vsel %vm835, %v832, %v652
  %v838 = vsel %vm835, %v833, %v654
  %v839 = vsel %vm835, %v834, %v656
  %vm840 = vcmask 654336
  %v841 = vsel %vm840, %v836, %v666
  %v842 = vsel %vm840, %v837, %v668
  %v843 = vsel %vm840, %v838, %v670
  %v844 = vsel %vm840, %v839, %v672
  %vm845 = vcmask 785408
  %v846 = vsel %vm845, %v841, %v682
  %v847 = vsel %vm845, %v842, %v684
  %v848 = vsel %vm845, %v843, %v686
  %v849 = vsel %vm845, %v844, %v688
  %vm850 = vcmask 916480
  %v851 = vsel %vm850, %v846, %v698
  %v852 = vsel %vm850, %v847, %v700
  %v853 = vsel %vm850, %v848, %v702
  %v854 = vsel %vm850, %v849, %v704
  %v855 = vsel %vm488, %v565, %v714
  %v856 = vsel %vm488, %v566, %v716
  %v857 = vsel %vm488, %v567, %v718
  %v858 = vsel %vm488, %v568, %v720
  %v859 = vsel %vm825, %v855, %v730
  %v860 = vsel %vm825, %v856, %v732
  %v861 = vsel %vm825, %v857, %v734
  %v862 = vsel %vm825, %v858, %v736
  %v863 = vsel %vm830, %v859, %v746
  %v864 = vsel %vm830, %v860, %v748
  %v865 = vsel %vm830, %v861, %v750
  %v866 = vsel %vm830, %v862, %v752
  %v867 = vsel %vm835, %v863, %v762
  %v868 = vsel %vm835, %v864, %v764
  %v869 = vsel %vm835, %v865, %v766
  %v870 = vsel %vm835, %v866, %v768
  %v871 = vsel %vm840, %v867, %v778
  %v872 = vsel %vm840, %v868, %v780
  %v873 = vsel %vm840, %v869, %v782
  %v874 = vsel %vm840, %v870, %v784
  %v875 = vsel %vm845, %v871, %v794
  %v876 = vsel %vm845, %v872, %v796
  %v877 = vsel %vm845, %v873, %v798
  %v878 = vsel %vm845, %v874, %v800
  %v879 = vsel %vm850, %v875, %v810
  %v880 = vsel %vm850, %v876, %v812
  %v881 = vsel %vm850, %v877, %v814
  %v882 = vsel %vm850, %v878, %v816
  %v883 = vld [vmem:[%s3] sm:$0xff]
  %v884 = vld [vmem:[%s3 + $0x8] sm:$0xff]
  %v885 = vld [vmem:[%s3 + $0x10] sm:$0xff]
  %v886 = vld [vmem:[%s3 + $0x18] sm:$0xff]
  %v887 = vld [vmem:[%s3 + $0x20] sm:$0xff]
  %v888 = vld [vmem:[%s3 + $0x28] sm:$0xff]
  %v889 = vld [vmem:[%s3 + $0x30] sm:$0xff]
  %v890 = vld [vmem:[%s3 + $0x38] sm:$0xff]
  %v891 = vld [vmem:[%s3 + $0x40] sm:$0xff]
  %v892 = vld [vmem:[%s3 + $0x48] sm:$0xff]
  %v893 = vld [vmem:[%s3 + $0x50] sm:$0xff]
  %v894 = vld [vmem:[%s3 + $0x58] sm:$0xff]
  %v895 = vld [vmem:[%s3 + $0x60] sm:$0xff]
  %v896 = vld [vmem:[%s3 + $0x68] sm:$0xff]
  %v897 = vld [vmem:[%s3 + $0x70] sm:$0xff]
  %v898 = vld [vmem:[%s3 + $0x78] sm:$0xff]
  %v899 = vld [vmem:[%s3 + $0x80] sm:$0xff]
  %v900 = vld [vmem:[%s3 + $0x88] sm:$0xff]
  %v901 = vld [vmem:[%s3 + $0x90] sm:$0xff]
  %v902 = vld [vmem:[%s3 + $0x98] sm:$0xff]
  %v903 = vld [vmem:[%s3 + $0xa0] sm:$0xff]
  %v904 = vld [vmem:[%s3 + $0xa8] sm:$0xff]
  %v905 = vld [vmem:[%s3 + $0xb0] sm:$0xff]
  %v906 = vld [vmem:[%s3 + $0xb8] sm:$0xff]
  %v907 = vld [vmem:[%s3 + $0xc0] sm:$0xff]
  %v908 = vld [vmem:[%s3 + $0xc8] sm:$0xff]
  %v909 = vld [vmem:[%s3 + $0xd0] sm:$0xff]
  %v910 = vld [vmem:[%s3 + $0xd8] sm:$0xff]
  %v911 = vld [vmem:[%s3 + $0xe0] sm:$0xff]
  %v912 = vld [vmem:[%s3 + $0xe8] sm:$0xff]
  %v913 = vld [vmem:[%s3 + $0xf0] sm:$0xff]
  %v914 = vld [vmem:[%s3 + $0xf8] sm:$0xff]
  %v915 = vld [vmem:[%s4] sm:$0x1]
  %v917 = vlaneseq
  %v918 = vshrl.u32 %v917, 7
  %v919 = vsub.s32 0, %v918
  %v920 = vrot.slane %v915, %v919
  %922 = vmatprep.subr.mxu0 0.0
  %923 = vmatpush1.msra.mxu0 %v883
  %924 = vmatprep.subr.mxu0 0.0
  %925 = vmatpush1.msra.mxu0 %v884
  %926 = vmatprep.subr.mxu0 0.0
  %927 = vmatpush1.msra.mxu0 %v885
  %928 = vmatprep.subr.mxu0 0.0
  %929 = vmatpush1.msra.mxu0 %v886
  %930 = vmatprep.subr.mxu0 0.0
  %931 = vmatpush1.msra.mxu0 %v887
  %932 = vmatprep.subr.mxu0 0.0
  %933 = vmatpush1.msra.mxu0 %v888
  %934 = vmatprep.subr.mxu0 0.0
  %935 = vmatpush1.msra.mxu0 %v889
  %936 = vmatprep.subr.mxu0 0.0
  %937 = vmatpush1.msra.mxu0 %v890
  %938 = vmatprep.subr.mxu0 0.0
  %939 = vmatpush1.msra.mxu0 %v891
  %940 = vmatprep.subr.mxu0 0.0
  %941 = vmatpush1.msra.mxu0 %v892
  %942 = vmatprep.subr.mxu0 0.0
  %943 = vmatpush1.msra.mxu0 %v893
  %944 = vmatprep.subr.mxu0 0.0
  %945 = vmatpush1.msra.mxu0 %v894
  %946 = vmatprep.subr.mxu0 0.0
  %947 = vmatpush1.msra.mxu0 %v895
  %948 = vmatprep.subr.mxu0 0.0
  %949 = vmatpush1.msra.mxu0 %v896
  %950 = vmatprep.subr.mxu0 0.0
  %951 = vmatpush1.msra.mxu0 %v897
  %952 = vmatprep.subr.mxu0 0.0
  %953 = vmatpush1.msra.mxu0 %v898
  %954 = vmatprep.subr.mxu0 0.0
  %955 = vmatpush1.msra.mxu0 %v899
  %956 = vmatprep.subr.mxu0 0.0
  %957 = vmatpush1.msra.mxu0 %v900
  %958 = vmatprep.subr.mxu0 0.0
  %959 = vmatpush1.msra.mxu0 %v901
  %960 = vmatprep.subr.mxu0 0.0
  %961 = vmatpush1.msra.mxu0 %v902
  %962 = vmatprep.subr.mxu0 0.0
  %963 = vmatpush1.msra.mxu0 %v903
  %964 = vmatprep.subr.mxu0 0.0
  %965 = vmatpush1.msra.mxu0 %v904
  %966 = vmatprep.subr.mxu0 0.0
  %967 = vmatpush1.msra.mxu0 %v905
  %968 = vmatprep.subr.mxu0 0.0
  %969 = vmatpush1.msra.mxu0 %v906
  %970 = vmatprep.subr.mxu0 0.0
  %971 = vmatpush1.msra.mxu0 %v907
  %972 = vmatprep.subr.mxu0 0.0
  %973 = vmatpush1.msra.mxu0 %v908
  %974 = vmatprep.subr.mxu0 0.0
  %975 = vmatpush1.msra.mxu0 %v909
  %976 = vmatprep.subr.mxu0 0.0
  %977 = vmatpush1.msra.mxu0 %v910
  %978 = vmatprep.subr.mxu0 0.0
  %979 = vmatpush1.msra.mxu0 %v911
  %980 = vmatprep.subr.mxu0 0.0
  %981 = vmatpush1.msra.mxu0 %v912
  %982 = vmatprep.subr.mxu0 0.0
  %983 = vmatpush1.msra.mxu0 %v913
  %984 = vmatprep.subr.mxu0 0.0
  %985 = vmatpush1.msra.mxu0 %v914
  %986 = vmatprep.mubr.f32.mxu0 %v879
  %987 = vmatmul.mubr.f32.gmra.mrb[0].mxu0 %v851
  %v988 = vpop.f32.mrb[0].mxu0
  %v989 = vadd.f32 %v920, %v988
  %v990 = vpop.f32.mrb[0].mxu0
  %991 = vmatprep.mubr.f32.mxu0 %v880
  %992 = vmatmul.mubr.f32.gmra.mrb[0].mxu0 %v852
  %v993 = vpop.f32.mrb[0].mxu0
  %v994 = vadd.f32 %v920, %v993
  %v995 = vpop.f32.mrb[0].mxu0
  %996 = vmatprep.mubr.f32.mxu0 %v881
  %997 = vmatmul.mubr.f32.gmra.mrb[0].mxu0 %v853
  %v998 = vpop.f32.mrb[0].mxu0
  %v999 = vadd.f32 %v920, %v998
  %v1000 = vpop.f32.mrb[0].mxu0
  %1001 = vmatprep.mubr.f32.mxu0 %v882
  %1002 = vmatmul.mubr.f32.gmra.mrb[0].mxu0 %v854
  %v1003 = vpop.f32.mrb[0].mxu0
  %v1004 = vadd.f32 %v920, %v1003
  %v1005 = vpop.f32.mrb[0].mxu0
  %1006 = vdwg.mxu0
  %v1007 = vmax.f32 %v989, 0.0
  %v1008 = vmax.f32 %v994, 0.0
  %v1009 = vmax.f32 %v999, 0.0
  %v1010 = vmax.f32 %v1004, 0.0
  %v1011 = vld [vmem:[#allocation2 + $0x8c] sm:$0xff]
  %v1012 = vld [vmem:[#allocation2 + $0x94] sm:$0xff]
  %v1013 = vld [vmem:[#allocation2 + $0x9c] sm:$0xff]
  %v1014 = vld [vmem:[#allocation2 + $0xa4] sm:$0xff]
  %v1015 = vld [vmem:[#allocation2 + $0x8d] sm:$0xff]
  %v1016 = vld [vmem:[#allocation2 + $0x95] sm:$0xff]
  %v1017 = vld [vmem:[#allocation2 + $0x9d] sm:$0xff]
  %v1018 = vld [vmem:[#allocation2 + $0xa5] sm:$0xff]
  %v1019 = vld [vmem:[#allocation2 + $0x8e] sm:$0xff]
  %v1020 = vld [vmem:[#allocation2 + $0x96] sm:$0xff]
  %v1021 = vld [vmem:[#allocation2 + $0x9e] sm:$0xff]
  %v1022 = vld [vmem:[#allocation2 + $0xa6] sm:$0xff]
  %v1023 = vld [vmem:[#allocation2 + $0x8f] sm:$0xff]
  %v1024 = vld [vmem:[#allocation2 + $0x97] sm:$0xff]
  %v1025 = vld [vmem:[#allocation2 + $0x9f] sm:$0xff]
  %v1026 = vld [vmem:[#allocation2 + $0xa7] sm:$0xff]
  %1027 = vrot.lane.b32.xlu0 %v553, 16
  %v1028 = vpop.permute.xlu0 %1027
  %1029 = vrot.lane.b32.xlu0 %v554, 16
  %v1030 = vpop.permute.xlu0 %1029
  %1031 = vrot.lane.b32.xlu0 %v555, 16
  %v1032 = vpop.permute.xlu0 %1031
  %1033 = vrot.lane.b32.xlu0 %v556, 16
  %v1034 = vpop.permute.xlu0 %1033
  %1039 = vrot.lane.b32.xlu0 %v557, 32
  %v1040 = vpop.permute.xlu0 %1039
  %1041 = vrot.lane.b32.xlu0 %v558, 32
  %v1042 = vpop.permute.xlu0 %1041
  %1043 = vrot.lane.b32.xlu0 %v559, 32
  %v1044 = vpop.permute.xlu0 %1043
  %1045 = vrot.lane.b32.xlu0 %v560, 32
  %v1046 = vpop.permute.xlu0 %1045
  %1051 = vrot.lane.b32.xlu0 %v561, 48
  %v1052 = vpop.permute.xlu0 %1051
  %1053 = vrot.lane.b32.xlu0 %v562, 48
  %v1054 = vpop.permute.xlu0 %1053
  %1055 = vrot.lane.b32.xlu0 %v563, 48
  %v1056 = vpop.permute.xlu0 %1055
  %1057 = vrot.lane.b32.xlu0 %v564, 48
  %v1058 = vpop.permute.xlu0 %1057
  %1067 = vrot.lane.b32.xlu0 %v565, 64
  %v1068 = vpop.permute.xlu0 %1067
  %1069 = vrot.lane.b32.xlu0 %v566, 64
  %v1070 = vpop.permute.xlu0 %1069
  %1071 = vrot.lane.b32.xlu0 %v567, 64
  %v1072 = vpop.permute.xlu0 %1071
  %1073 = vrot.lane.b32.xlu0 %v568, 64
  %v1074 = vpop.permute.xlu0 %1073
  %1079 = vrot.lane.b32.xlu0 %v569, 80
  %v1080 = vpop.permute.xlu0 %1079
  %1081 = vrot.lane.b32.xlu0 %v570, 80
  %v1082 = vpop.permute.xlu0 %1081
  %1083 = vrot.lane.b32.xlu0 %v571, 80
  %v1084 = vpop.permute.xlu0 %1083
  %1085 = vrot.lane.b32.xlu0 %v572, 80
  %v1086 = vpop.permute.xlu0 %1085
  %1091 = vrot.lane.b32.xlu0 %v573, 96
  %v1092 = vpop.permute.xlu0 %1091
  %1093 = vrot.lane.b32.xlu0 %v574, 96
  %v1094 = vpop.permute.xlu0 %1093
  %1095 = vrot.lane.b32.xlu0 %v575, 96
  %v1096 = vpop.permute.xlu0 %1095
  %1097 = vrot.lane.b32.xlu0 %v576, 96
  %v1098 = vpop.permute.xlu0 %1097
  %1103 = vrot.lane.b32.xlu0 %v577, 112
  %v1104 = vpop.permute.xlu0 %1103
  %1105 = vrot.lane.b32.xlu0 %v578, 112
  %v1106 = vpop.permute.xlu0 %1105
  %1107 = vrot.lane.b32.xlu0 %v579, 112
  %v1108 = vpop.permute.xlu0 %1107
  %1109 = vrot.lane.b32.xlu0 %v580, 112
  %v1110 = vpop.permute.xlu0 %1109
  %1115 = vrot.lane.b32.xlu0 %v585, 16
  %v1116 = vpop.permute.xlu0 %1115
  %1117 = vrot.lane.b32.xlu0 %v586, 16
  %v1118 = vpop.permute.xlu0 %1117
  %1119 = vrot.lane.b32.xlu0 %v587, 16
  %v1120 = vpop.permute.xlu0 %1119
  %1121 = vrot.lane.b32.xlu0 %v588, 16
  %v1122 = vpop.permute.xlu0 %1121
  %1127 = vrot.lane.b32.xlu0 %v589, 32
  %v1128 = vpop.permute.xlu0 %1127
  %1129 = vrot.lane.b32.xlu0 %v590, 32
  %v1130 = vpop.permute.xlu0 %1129
  %1131 = vrot.lane.b32.xlu0 %v591, 32
  %v1132 = vpop.permute.xlu0 %1131
  %1133 = vrot.lane.b32.xlu0 %v592, 32
  %v1134 = vpop.permute.xlu0 %1133
  %1139 = vrot.lane.b32.xlu0 %v593, 48
  %v1140 = vpop.permute.xlu0 %1139
  %1141 = vrot.lane.b32.xlu0 %v594, 48
  %v1142 = vpop.permute.xlu0 %1141
  %1143 = vrot.lane.b32.xlu0 %v595, 48
  %v1144 = vpop.permute.xlu0 %1143
  %1145 = vrot.lane.b32.xlu0 %v596, 48
  %v1146 = vpop.permute.xlu0 %1145
  %1155 = vrot.lane.b32.xlu0 %v1011, 64
  %v1156 = vpop.permute.xlu0 %1155
  %1157 = vrot.lane.b32.xlu0 %v1012, 64
  %v1158 = vpop.permute.xlu0 %1157
  %1159 = vrot.lane.b32.xlu0 %v1013, 64
  %v1160 = vpop.permute.xlu0 %1159
  %1161 = vrot.lane.b32.xlu0 %v1014, 64
  %v1162 = vpop.permute.xlu0 %1161
  %1171 = vrot.lane.b32.xlu0 %v1015, 80
  %v1172 = vpop.permute.xlu0 %1171
  %1173 = vrot.lane.b32.xlu0 %v1016, 80
  %v1174 = vpop.permute.xlu0 %1173
  %1175 = vrot.lane.b32.xlu0 %v1017, 80
  %v1176 = vpop.permute.xlu0 %1175
  %1177 = vrot.lane.b32.xlu0 %v1018, 80
  %v1178 = vpop.permute.xlu0 %1177
  %1187 = vrot.lane.b32.xlu0 %v1019, 96
  %v1188 = vpop.permute.xlu0 %1187
  %1189 = vrot.lane.b32.xlu0 %v1020, 96
  %v1190 = vpop.permute.xlu0 %1189
  %1191 = vrot.lane.b32.xlu0 %v1021, 96
  %v1192 = vpop.permute.xlu0 %1191
  %1193 = vrot.lane.b32.xlu0 %v1022, 96
  %v1194 = vpop.permute.xlu0 %1193
  %1203 = vrot.lane.b32.xlu0 %v1023, 112
  %v1204 = vpop.permute.xlu0 %1203
  %1205 = vrot.lane.b32.xlu0 %v1024, 112
  %v1206 = vpop.permute.xlu0 %1205
  %1207 = vrot.lane.b32.xlu0 %v1025, 112
  %v1208 = vpop.permute.xlu0 %1207
  %1209 = vrot.lane.b32.xlu0 %v1026, 112
  %v1210 = vpop.permute.xlu0 %1209
  %v1215 = vsel %vm488, %v549, %v1028
  %v1216 = vsel %vm488, %v550, %v1030
  %v1217 = vsel %vm488, %v551, %v1032
  %v1218 = vsel %vm488, %v552, %v1034
  %v1219 = vsel %vm825, %v1215, %v1040
  %v1220 = vsel %vm825, %v1216, %v1042
  %v1221 = vsel %vm825, %v1217, %v1044
  %v1222 = vsel %vm825, %v1218, %v1046
  %v1223 = vsel %vm830, %v1219, %v1052
  %v1224 = vsel %vm830, %v1220, %v1054
  %v1225 = vsel %vm830, %v1221, %v1056
  %v1226 = vsel %vm830, %v1222, %v1058
  %v1227 = vsel %vm835, %v1223, %v1068
  %v1228 = vsel %vm835, %v1224, %v1070
  %v1229 = vsel %vm835, %v1225, %v1072
  %v1230 = vsel %vm835, %v1226, %v1074
  %v1231 = vsel %vm840, %v1227, %v1080
  %v1232 = vsel %vm840, %v1228, %v1082
  %v1233 = vsel %vm840, %v1229, %v1084
  %v1234 = vsel %vm840, %v1230, %v1086
  %v1235 = vsel %vm845, %v1231, %v1092
  %v1236 = vsel %vm845, %v1232, %v1094
  %v1237 = vsel %vm845, %v1233, %v1096
  %v1238 = vsel %vm845, %v1234, %v1098
  %v1239 = vsel %vm850, %v1235, %v1104
  %v1240 = vsel %vm850, %v1236, %v1106
  %v1241 = vsel %vm850, %v1237, %v1108
  %v1242 = vsel %vm850, %v1238, %v1110
  %v1243 = vsel %vm488, %v581, %v1116
  %v1244 = vsel %vm488, %v582, %v1118
  %v1245 = vsel %vm488, %v583, %v1120
  %v1246 = vsel %vm488, %v584, %v1122
  %v1247 = vsel %vm825, %v1243, %v1128
  %v1248 = vsel %vm825, %v1244, %v1130
  %v1249 = vsel %vm825, %v1245, %v1132
  %v1250 = vsel %vm825, %v1246, %v1134
  %v1251 = vsel %vm830, %v1247, %v1140
  %v1252 = vsel %vm830, %v1248, %v1142
  %v1253 = vsel %vm830, %v1249, %v1144
  %v1254 = vsel %vm830, %v1250, %v1146
  %v1255 = vsel %vm835, %v1251, %v1156
  %v1256 = vsel %vm835, %v1252, %v1158
  %v1257 = vsel %vm835, %v1253, %v1160
  %v1258 = vsel %vm835, %v1254, %v1162
  %v1259 = vsel %vm840, %v1255, %v1172
  %v1260 = vsel %vm840, %v1256, %v1174
  %v1261 = vsel %vm840, %v1257, %v1176
  %v1262 = vsel %vm840, %v1258, %v1178
  %v1263 = vsel %vm845, %v1259, %v1188
  %v1264 = vsel %vm845, %v1260, %v1190
  %v1265 = vsel %vm845, %v1261, %v1192
  %v1266 = vsel %vm845, %v1262, %v1194
  %v1267 = vsel %vm850, %v1263, %v1204
  %v1268 = vsel %vm850, %v1264, %v1206
  %v1269 = vsel %vm850, %v1265, %v1208
  %v1270 = vsel %vm850, %v1266, %v1210
  %1271 = vmatprep.subr.mxu0 0.0
  %1272 = vmatpush1.msra.mxu0 %v883
  %1273 = vmatprep.subr.mxu0 0.0
  %1274 = vmatpush1.msra.mxu0 %v884
  %1275 = vmatprep.subr.mxu0 0.0
  %1276 = vmatpush1.msra.mxu0 %v885
  %1277 = vmatprep.subr.mxu0 0.0
  %1278 = vmatpush1.msra.mxu0 %v886
  %1279 = vmatprep.subr.mxu0 0.0
  %1280 = vmatpush1.msra.mxu0 %v887
  %1281 = vmatprep.subr.mxu0 0.0
  %1282 = vmatpush1.msra.mxu0 %v888
  %1283 = vmatprep.subr.mxu0 0.0
  %1284 = vmatpush1.msra.mxu0 %v889
  %1285 = vmatprep.subr.mxu0 0.0
  %1286 = vmatpush1.msra.mxu0 %v890
  %1287 = vmatprep.subr.mxu0 0.0
  %1288 = vmatpush1.msra.mxu0 %v891
  %1289 = vmatprep.subr.mxu0 0.0
  %1290 = vmatpush1.msra.mxu0 %v892
  %1291 = vmatprep.subr.mxu0 0.0
  %1292 = vmatpush1.msra.mxu0 %v893
  %1293 = vmatprep.subr.mxu0 0.0
  %1294 = vmatpush1.msra.mxu0 %v894
  %1295 = vmatprep.subr.mxu0 0.0
  %1296 = vmatpush1.msra.mxu0 %v895
  %1297 = vmatprep.subr.mxu0 0.0
  %1298 = vmatpush1.msra.mxu0 %v896
  %1299 = vmatprep.subr.mxu0 0.0
  %1300 = vmatpush1.msra.mxu0 %v897
  %1301 = vmatprep.subr.mxu0 0.0
  %1302 = vmatpush1.msra.mxu0 %v898
  %1303 = vmatprep.subr.mxu0 0.0
  %1304 = vmatpush1.msra.mxu0 %v899
  %1305 = vmatprep.subr.mxu0 0.0
  %1306 = vmatpush1.msra.mxu0 %v900
  %1307 = vmatprep.subr.mxu0 0.0
  %1308 = vmatpush1.msra.mxu0 %v901
  %1309 = vmatprep.subr.mxu0 0.0
  %1310 = vmatpush1.msra.mxu0 %v902
  %1311 = vmatprep.subr.mxu0 0.0
  %1312 = vmatpush1.msra.mxu0 %v903
  %1313 = vmatprep.subr.mxu0 0.0
  %1314 = vmatpush1.msra.mxu0 %v904
  %1315 = vmatprep.subr.mxu0 0.0
  %1316 = vmatpush1.msra.mxu0 %v905
  %1317 = vmatprep.subr.mxu0 0.0
  %1318 = vmatpush1.msra.mxu0 %v906
  %1319 = vmatprep.subr.mxu0 0.0
  %1320 = vmatpush1.msra.mxu0 %v907
  %1321 = vmatprep.subr.mxu0 0.0
  %1322 = vmatpush1.msra.mxu0 %v908
  %1323 = vmatprep.subr.mxu0 0.0
  %1324 = vmatpush1.msra.mxu0 %v909
  %1325 = vmatprep.subr.mxu0 0.0
  %1326 = vmatpush1.msra.mxu0 %v910
  %1327 = vmatprep.subr.mxu0 0.0
  %1328 = vmatpush1.msra.mxu0 %v911
  %1329 = vmatprep.subr.mxu0 0.0
  %1330 = vmatpush1.msra.mxu0 %v912
  %1331 = vmatprep.subr.mxu0 0.0
  %1332 = vmatpush1.msra.mxu0 %v913
  %1333 = vmatprep.subr.mxu0 0.0
  %1334 = vmatpush1.msra.mxu0 %v914
  %1335 = vmatprep.mubr.f32.mxu0 %v1267
  %1336 = vmatmul.mubr.f32.gmra.mrb[0].mxu0 %v1239
  %v1337 = vpop.f32.mrb[0].mxu0
  %v1338 = vadd.f32 %v920, %v1337
  %v1339 = vpop.f32.mrb[0].mxu0
  %1340 = vmatprep.mubr.f32.mxu0 %v1268
  %1341 = vmatmul.mubr.f32.gmra.mrb[0].mxu0 %v1240
  %v1342 = vpop.f32.mrb[0].mxu0
  %v1343 = vadd.f32 %v920, %v1342
  %v1344 = vpop.f32.mrb[0].mxu0
  %1345 = vmatprep.mubr.f32.mxu0 %v1269
  %1346 = vmatmul.mubr.f32.gmra.mrb[0].mxu0 %v1241
  %v1347 = vpop.f32.mrb[0].mxu0
  %v1348 = vadd.f32 %v920, %v1347
  %v1349 = vpop.f32.mrb[0].mxu0
  %1350 = vmatprep.mubr.f32.mxu0 %v1270
  %1351 = vmatmul.mubr.f32.gmra.mrb[0].mxu0 %v1242
  %v1352 = vpop.f32.mrb[0].mxu0
  %v1353 = vadd.f32 %v920, %v1352
  %v1354 = vpop.f32.mrb[0].mxu0
  %1355 = vdwg.mxu0
  %v1356 = vmax.f32 %v1338, 0.0
  %v1357 = vmax.f32 %v1343, 0.0
  %v1358 = vmax.f32 %v1348, 0.0
  %v1359 = vmax.f32 %v1353, 0.0
  %v1360 = vld [vmem:[#allocation2 + $0xaf] sm:$0xff]
  %v1361 = vld [vmem:[#allocation2 + $0xb7] sm:$0xff]
  %v1362 = vld [vmem:[#allocation2 + $0xbf] sm:$0xff]
  %v1363 = vld [vmem:[#allocation2 + $0xc7] sm:$0xff]
  %v1364 = vld [vmem:[#allocation2 + $0xb0] sm:$0xff]
  %v1365 = vld [vmem:[#allocation2 + $0xb8] sm:$0xff]
  %v1366 = vld [vmem:[#allocation2 + $0xc0] sm:$0xff]
  %v1367 = vld [vmem:[#allocation2 + $0xc8] sm:$0xff]
  %v1368 = vld [vmem:[#allocation2 + $0xb1] sm:$0xff]
  %v1369 = vld [vmem:[#allocation2 + $0xb9] sm:$0xff]
  %v1370 = vld [vmem:[#allocation2 + $0xc1] sm:$0xff]
  %v1371 = vld [vmem:[#allocation2 + $0xc9] sm:$0xff]
  %v1372 = vld [vmem:[#allocation2 + $0xb2] sm:$0xff]
  %v1373 = vld [vmem:[#allocation2 + $0xba] sm:$0xff]
  %v1374 = vld [vmem:[#allocation2 + $0xc2] sm:$0xff]
  %v1375 = vld [vmem:[#allocation2 + $0xca] sm:$0xff]
  %v1376 = vld [vmem:[#allocation2 + $0xd2] sm:$0xff]
  %v1377 = vld [vmem:[#allocation2 + $0xda] sm:$0xff]
  %v1378 = vld [vmem:[#allocation2 + $0xe2] sm:$0xff]
  %v1379 = vld [vmem:[#allocation2 + $0xea] sm:$0xff]
  %v1380 = vld [vmem:[#allocation2 + $0xd3] sm:$0xff]
  %v1381 = vld [vmem:[#allocation2 + $0xdb] sm:$0xff]
  %v1382 = vld [vmem:[#allocation2 + $0xe3] sm:$0xff]
  %v1383 = vld [vmem:[#allocation2 + $0xeb] sm:$0xff]
  %v1384 = vld [vmem:[#allocation2 + $0xd4] sm:$0xff]
  %v1385 = vld [vmem:[#allocation2 + $0xdc] sm:$0xff]
  %v1386 = vld [vmem:[#allocation2 + $0xe4] sm:$0xff]
  %v1387 = vld [vmem:[#allocation2 + $0xec] sm:$0xff]
  %v1388 = vld [vmem:[#allocation2 + $0xd5] sm:$0xff]
  %v1389 = vld [vmem:[#allocation2 + $0xdd] sm:$0xff]
  %v1390 = vld [vmem:[#allocation2 + $0xe5] sm:$0xff]
  %v1391 = vld [vmem:[#allocation2 + $0xed] sm:$0xff]
  %v1392 = vld [vmem:[#allocation2 + $0xf5] sm:$0xff]
  %v1393 = vld [vmem:[#allocation2 + $0xfd] sm:$0xff]
  %v1394 = vld [vmem:[#allocation2 + $0x105] sm:$0xff]
  %v1395 = vld [vmem:[#allocation2 + $0x10d] sm:$0xff]
  %v1396 = vld [vmem:[#allocation2 + $0xf6] sm:$0xff]
  %v1397 = vld [vmem:[#allocation2 + $0xfe] sm:$0xff]
  %v1398 = vld [vmem:[#allocation2 + $0x106] sm:$0xff]
  %v1399 = vld [vmem:[#allocation2 + $0x10e] sm:$0xff]
  %v1400 = vld [vmem:[#allocation2 + $0xf7] sm:$0xff]
  %v1401 = vld [vmem:[#allocation2 + $0xff] sm:$0xff]
  %v1402 = vld [vmem:[#allocation2 + $0x107] sm:$0xff]
  %v1403 = vld [vmem:[#allocation2 + $0x10f] sm:$0xff]
  %v1404 = vld [vmem:[#allocation2 + $0xf8] sm:$0xff]
  %v1405 = vld [vmem:[#allocation2 + $0x100] sm:$0xff]
  %v1406 = vld [vmem:[#allocation2 + $0x108] sm:$0xff]
  %v1407 = vld [vmem:[#allocation2 + $0x110] sm:$0xff]
  %v1408 = vld [vmem:[#allocation2 + $0x118] sm:$0xff]
  %v1409 = vld [vmem:[#allocation2 + $0x120] sm:$0xff]
  %v1410 = vld [vmem:[#allocation2 + $0x128] sm:$0xff]
  %v1411 = vld [vmem:[#allocation2 + $0x130] sm:$0xff]
  %v1412 = vld [vmem:[#allocation2 + $0x119] sm:$0xff]
  %v1413 = vld [vmem:[#allocation2 + $0x121] sm:$0xff]
  %v1414 = vld [vmem:[#allocation2 + $0x129] sm:$0xff]
  %v1415 = vld [vmem:[#allocation2 + $0x131] sm:$0xff]
  %v1416 = vld [vmem:[#allocation2 + $0x11a] sm:$0xff]
  %v1417 = vld [vmem:[#allocation2 + $0x122] sm:$0xff]
  %v1418 = vld [vmem:[#allocation2 + $0x12a] sm:$0xff]
  %v1419 = vld [vmem:[#allocation2 + $0x132] sm:$0xff]
  %v1420 = vld [vmem:[#allocation2 + $0x11b] sm:$0xff]
  %v1421 = vld [vmem:[#allocation2 + $0x123] sm:$0xff]
  %v1422 = vld [vmem:[#allocation2 + $0x12b] sm:$0xff]
  %v1423 = vld [vmem:[#allocation2 + $0x133] sm:$0xff]
  %1428 = vrot.lane.b32.xlu0 %v1364, 16
  %v1429 = vpop.permute.xlu0 %1428
  %1430 = vrot.lane.b32.xlu0 %v1365, 16
  %v1431 = vpop.permute.xlu0 %1430
  %1432 = vrot.lane.b32.xlu0 %v1366, 16
  %v1433 = vpop.permute.xlu0 %1432
  %1434 = vrot.lane.b32.xlu0 %v1367, 16
  %v1435 = vpop.permute.xlu0 %1434
  %1444 = vrot.lane.b32.xlu0 %v1368, 32
  %v1445 = vpop.permute.xlu0 %1444
  %1446 = vrot.lane.b32.xlu0 %v1369, 32
  %v1447 = vpop.permute.xlu0 %1446
  %1448 = vrot.lane.b32.xlu0 %v1370, 32
  %v1449 = vpop.permute.xlu0 %1448
  %1450 = vrot.lane.b32.xlu0 %v1371, 32
  %v1451 = vpop.permute.xlu0 %1450
  %1460 = vrot.lane.b32.xlu0 %v1372, 48
  %v1461 = vpop.permute.xlu0 %1460
  %1462 = vrot.lane.b32.xlu0 %v1373, 48
  %v1463 = vpop.permute.xlu0 %1462
  %1464 = vrot.lane.b32.xlu0 %v1374, 48
  %v1465 = vpop.permute.xlu0 %1464
  %1466 = vrot.lane.b32.xlu0 %v1375, 48
  %v1467 = vpop.permute.xlu0 %1466
  %1476 = vrot.lane.b32.xlu0 %v1376, 64
  %v1477 = vpop.permute.xlu0 %1476
  %1478 = vrot.lane.b32.xlu0 %v1377, 64
  %v1479 = vpop.permute.xlu0 %1478
  %1480 = vrot.lane.b32.xlu0 %v1378, 64
  %v1481 = vpop.permute.xlu0 %1480
  %1482 = vrot.lane.b32.xlu0 %v1379, 64
  %v1483 = vpop.permute.xlu0 %1482
  %1492 = vrot.lane.b32.xlu0 %v1380, 80
  %v1493 = vpop.permute.xlu0 %1492
  %1494 = vrot.lane.b32.xlu0 %v1381, 80
  %v1495 = vpop.permute.xlu0 %1494
  %1496 = vrot.lane.b32.xlu0 %v1382, 80
  %v1497 = vpop.permute.xlu0 %1496
  %1498 = vrot.lane.b32.xlu0 %v1383, 80
  %v1499 = vpop.permute.xlu0 %1498
  %1508 = vrot.lane.b32.xlu0 %v1384, 96
  %v1509 = vpop.permute.xlu0 %1508
  %1510 = vrot.lane.b32.xlu0 %v1385, 96
  %v1511 = vpop.permute.xlu0 %1510
  %1512 = vrot.lane.b32.xlu0 %v1386, 96
  %v1513 = vpop.permute.xlu0 %1512
  %1514 = vrot.lane.b32.xlu0 %v1387, 96
  %v1515 = vpop.permute.xlu0 %1514
  %1524 = vrot.lane.b32.xlu0 %v1388, 112
  %v1525 = vpop.permute.xlu0 %1524
  %1526 = vrot.lane.b32.xlu0 %v1389, 112
  %v1527 = vpop.permute.xlu0 %1526
  %1528 = vrot.lane.b32.xlu0 %v1390, 112
  %v1529 = vpop.permute.xlu0 %1528
  %1530 = vrot.lane.b32.xlu0 %v1391, 112
  %v1531 = vpop.permute.xlu0 %1530
  %1540 = vrot.lane.b32.xlu0 %v1396, 16
  %v1541 = vpop.permute.xlu0 %1540
  %1542 = vrot.lane.b32.xlu0 %v1397, 16
  %v1543 = vpop.permute.xlu0 %1542
  %1544 = vrot.lane.b32.xlu0 %v1398, 16
  %v1545 = vpop.permute.xlu0 %1544
  %1546 = vrot.lane.b32.xlu0 %v1399, 16
  %v1547 = vpop.permute.xlu0 %1546
  %1556 = vrot.lane.b32.xlu0 %v1400, 32
  %v1557 = vpop.permute.xlu0 %1556
  %1558 = vrot.lane.b32.xlu0 %v1401, 32
  %v1559 = vpop.permute.xlu0 %1558
  %1560 = vrot.lane.b32.xlu0 %v1402, 32
  %v1561 = vpop.permute.xlu0 %1560
  %1562 = vrot.lane.b32.xlu0 %v1403, 32
  %v1563 = vpop.permute.xlu0 %1562
  %1572 = vrot.lane.b32.xlu0 %v1404, 48
  %v1573 = vpop.permute.xlu0 %1572
  %1574 = vrot.lane.b32.xlu0 %v1405, 48
  %v1575 = vpop.permute.xlu0 %1574
  %1576 = vrot.lane.b32.xlu0 %v1406, 48
  %v1577 = vpop.permute.xlu0 %1576
  %1578 = vrot.lane.b32.xlu0 %v1407, 48
  %v1579 = vpop.permute.xlu0 %1578
  %1588 = vrot.lane.b32.xlu0 %v1408, 64
  %v1589 = vpop.permute.xlu0 %1588
  %1590 = vrot.lane.b32.xlu0 %v1409, 64
  %v1591 = vpop.permute.xlu0 %1590
  %1592 = vrot.lane.b32.xlu0 %v1410, 64
  %v1593 = vpop.permute.xlu0 %1592
  %1594 = vrot.lane.b32.xlu0 %v1411, 64
  %v1595 = vpop.permute.xlu0 %1594
  %1604 = vrot.lane.b32.xlu0 %v1412, 80
  %v1605 = vpop.permute.xlu0 %1604
  %1606 = vrot.lane.b32.xlu0 %v1413, 80
  %v1607 = vpop.permute.xlu0 %1606
  %1608 = vrot.lane.b32.xlu0 %v1414, 80
  %v1609 = vpop.permute.xlu0 %1608
  %1610 = vrot.lane.b32.xlu0 %v1415, 80
  %v1611 = vpop.permute.xlu0 %1610
  %1620 = vrot.lane.b32.xlu0 %v1416, 96
  %v1621 = vpop.permute.xlu0 %1620
  %1622 = vrot.lane.b32.xlu0 %v1417, 96
  %v1623 = vpop.permute.xlu0 %1622
  %1624 = vrot.lane.b32.xlu0 %v1418, 96
  %v1625 = vpop.permute.xlu0 %1624
  %1626 = vrot.lane.b32.xlu0 %v1419, 96
  %v1627 = vpop.permute.xlu0 %1626
  %1636 = vrot.lane.b32.xlu0 %v1420, 112
  %v1637 = vpop.permute.xlu0 %1636
  %1638 = vrot.lane.b32.xlu0 %v1421, 112
  %v1639 = vpop.permute.xlu0 %1638
  %1640 = vrot.lane.b32.xlu0 %v1422, 112
  %v1641 = vpop.permute.xlu0 %1640
  %1642 = vrot.lane.b32.xlu0 %v1423, 112
  %v1643 = vpop.permute.xlu0 %1642
  %v1648 = vsel %vm488, %v1360, %v1429
  %v1649 = vsel %vm488, %v1361, %v1431
  %v1650 = vsel %vm488, %v1362, %v1433
  %v1651 = vsel %vm488, %v1363, %v1435
  %v1652 = vsel %vm825, %v1648, %v1445
  %v1653 = vsel %vm825, %v1649, %v1447
  %v1654 = vsel %vm825, %v1650, %v1449
  %v1655 = vsel %vm825, %v1651, %v1451
  %v1656 = vsel %vm830, %v1652, %v1461
  %v1657 = vsel %vm830, %v1653, %v1463
  %v1658 = vsel %vm830, %v1654, %v1465
  %v1659 = vsel %vm830, %v1655, %v1467
  %v1660 = vsel %vm835, %v1656, %v1477
  %v1661 = vsel %vm835, %v1657, %v1479
  %v1662 = vsel %vm835, %v1658, %v1481
  %v1663 = vsel %vm835, %v1659, %v1483
  %v1664 = vsel %vm840, %v1660, %v1493
  %v1665 = vsel %vm840, %v1661, %v1495
  %v1666 = vsel %vm840, %v1662, %v1497
  %v1667 = vsel %vm840, %v1663, %v1499
  %v1668 = vsel %vm845, %v1664, %v1509
  %v1669 = vsel %vm845, %v1665, %v1511
  %v1670 = vsel %vm845, %v1666, %v1513
  %v1671 = vsel %vm845, %v1667, %v1515
  %v1672 = vsel %vm850, %v1668, %v1525
  %v1673 = vsel %vm850, %v1669, %v1527
  %v1674 = vsel %vm850, %v1670, %v1529
  %v1675 = vsel %vm850, %v1671, %v1531
  %v1676 = vsel %vm488, %v1392, %v1541
  %v1677 = vsel %vm488, %v1393, %v1543
  %v1678 = vsel %vm488, %v1394, %v1545
  %v1679 = vsel %vm488, %v1395, %v1547
  %v1680 = vsel %vm825, %v1676, %v1557
  %v1681 = vsel %vm825, %v1677, %v1559
  %v1682 = vsel %vm825, %v1678, %v1561
  %v1683 = vsel %vm825, %v1679, %v1563
  %v1684 = vsel %vm830, %v1680, %v1573
  %v1685 = vsel %vm830, %v1681, %v1575
  %v1686 = vsel %vm830, %v1682, %v1577
  %v1687 = vsel %vm830, %v1683, %v1579
  %v1688 = vsel %vm835, %v1684, %v1589
  %v1689 = vsel %vm835, %v1685, %v1591
  %v1690 = vsel %vm835, %v1686, %v1593
  %v1691 = vsel %vm835, %v1687, %v1595
  %v1692 = vsel %vm840, %v1688, %v1605
  %v1693 = vsel %vm840, %v1689, %v1607
  %v1694 = vsel %vm840, %v1690, %v1609
  %v1695 = vsel %vm840, %v1691, %v1611
  %v1696 = vsel %vm845, %v1692, %v1621
  %v1697 = vsel %vm845, %v1693, %v1623
  %v1698 = vsel %vm845, %v1694, %v1625
  %v1699 = vsel %vm845, %v1695, %v1627
  %v1700 = vsel %vm850, %v1696, %v1637
  %v1701 = vsel %vm850, %v1697, %v1639
  %v1702 = vsel %vm850, %v1698, %v1641
  %v1703 = vsel %vm850, %v1699, %v1643
  %1704 = vmatprep.subr.mxu0 0.0
  %1705 = vmatpush1.msra.mxu0 %v883
  %1706 = vmatprep.subr.mxu0 0.0
  %1707 = vmatpush1.msra.mxu0 %v884
  %1708 = vmatprep.subr.mxu0 0.0
  %1709 = vmatpush1.msra.mxu0 %v885
  %1710 = vmatprep.subr.mxu0 0.0
  %1711 = vmatpush1.msra.mxu0 %v886
  %1712 = vmatprep.subr.mxu0 0.0
  %1713 = vmatpush1.msra.mxu0 %v887
  %1714 = vmatprep.subr.mxu0 0.0
  %1715 = vmatpush1.msra.mxu0 %v888
  %1716 = vmatprep.subr.mxu0 0.0
  %1717 = vmatpush1.msra.mxu0 %v889
  %1718 = vmatprep.subr.mxu0 0.0
  %1719 = vmatpush1.msra.mxu0 %v890
  %1720 = vmatprep.subr.mxu0 0.0
  %1721 = vmatpush1.msra.mxu0 %v891
  %1722 = vmatprep.subr.mxu0 0.0
  %1723 = vmatpush1.msra.mxu0 %v892
  %1724 = vmatprep.subr.mxu0 0.0
  %1725 = vmatpush1.msra.mxu0 %v893
  %1726 = vmatprep.subr.mxu0 0.0
  %1727 = vmatpush1.msra.mxu0 %v894
  %1728 = vmatprep.subr.mxu0 0.0
  %1729 = vmatpush1.msra.mxu0 %v895
  %1730 = vmatprep.subr.mxu0 0.0
  %1731 = vmatpush1.msra.mxu0 %v896
  %1732 = vmatprep.subr.mxu0 0.0
  %1733 = vmatpush1.msra.mxu0 %v897
  %1734 = vmatprep.subr.mxu0 0.0
  %1735 = vmatpush1.msra.mxu0 %v898
  %1736 = vmatprep.subr.mxu0 0.0
  %1737 = vmatpush1.msra.mxu0 %v899
  %1738 = vmatprep.subr.mxu0 0.0
  %1739 = vmatpush1.msra.mxu0 %v900
  %1740 = vmatprep.subr.mxu0 0.0
  %1741 = vmatpush1.msra.mxu0 %v901
  %1742 = vmatprep.subr.mxu0 0.0
  %1743 = vmatpush1.msra.mxu0 %v902
  %1744 = vmatprep.subr.mxu0 0.0
  %1745 = vmatpush1.msra.mxu0 %v903
  %1746 = vmatprep.subr.mxu0 0.0
  %1747 = vmatpush1.msra.mxu0 %v904
  %1748 = vmatprep.subr.mxu0 0.0
  %1749 = vmatpush1.msra.mxu0 %v905
  %1750 = vmatprep.subr.mxu0 0.0
  %1751 = vmatpush1.msra.mxu0 %v906
  %1752 = vmatprep.subr.mxu0 0.0
  %1753 = vmatpush1.msra.mxu0 %v907
  %1754 = vmatprep.subr.mxu0 0.0
  %1755 = vmatpush1.msra.mxu0 %v908
  %1756 = vmatprep.subr.mxu0 0.0
  %1757 = vmatpush1.msra.mxu0 %v909
  %1758 = vmatprep.subr.mxu0 0.0
  %1759 = vmatpush1.msra.mxu0 %v910
  %1760 = vmatprep.subr.mxu0 0.0
  %1761 = vmatpush1.msra.mxu0 %v911
  %1762 = vmatprep.subr.mxu0 0.0
  %1763 = vmatpush1.msra.mxu0 %v912
  %1764 = vmatprep.subr.mxu0 0.0
  %1765 = vmatpush1.msra.mxu0 %v913
  %1766 = vmatprep.subr.mxu0 0.0
  %1767 = vmatpush1.msra.mxu0 %v914
  %1768 = vmatprep.mubr.f32.mxu0 %v1700
  %1769 = vmatmul.mubr.f32.gmra.mrb[0].mxu0 %v1672
  %v1770 = vpop.f32.mrb[0].mxu0
  %v1771 = vadd.f32 %v920, %v1770
  %v1772 = vpop.f32.mrb[0].mxu0
  %1773 = vmatprep.mubr.f32.mxu0 %v1701
  %1774 = vmatmul.mubr.f32.gmra.mrb[0].mxu0 %v1673
  %v1775 = vpop.f32.mrb[0].mxu0
  %v1776 = vadd.f32 %v920, %v1775
  %v1777 = vpop.f32.mrb[0].mxu0
  %1778 = vmatprep.mubr.f32.mxu0 %v1702
  %1779 = vmatmul.mubr.f32.gmra.mrb[0].mxu0 %v1674
  %v1780 = vpop.f32.mrb[0].mxu0
  %v1781 = vadd.f32 %v920, %v1780
  %v1782 = vpop.f32.mrb[0].mxu0
  %1783 = vmatprep.mubr.f32.mxu0 %v1703
  %1784 = vmatmul.mubr.f32.gmra.mrb[0].mxu0 %v1675
  %v1785 = vpop.f32.mrb[0].mxu0
  %v1786 = vadd.f32 %v920, %v1785
  %v1787 = vpop.f32.mrb[0].mxu0
  %1788 = vdwg.mxu0
  %v1789 = vmax.f32 %v1771, 0.0
  %v1790 = vmax.f32 %v1776, 0.0
  %v1791 = vmax.f32 %v1781, 0.0
  %v1792 = vmax.f32 %v1786, 0.0
  %v1793 = vld [vmem:[#allocation2 + $0x13b] sm:$0xff]
  %v1794 = vld [vmem:[#allocation2 + $0x143] sm:$0xff]
  %v1795 = vld [vmem:[#allocation2 + $0x14b] sm:$0xff]
  %v1796 = vld [vmem:[#allocation2 + $0x153] sm:$0xff]
  %v1797 = vld [vmem:[#allocation2 + $0x13c] sm:$0xff]
  %v1798 = vld [vmem:[#allocation2 + $0x144] sm:$0xff]
  %v1799 = vld [vmem:[#allocation2 + $0x14c] sm:$0xff]
  %v1800 = vld [vmem:[#allocation2 + $0x154] sm:$0xff]
  %v1801 = vld [vmem:[#allocation2 + $0x13d] sm:$0xff]
  %v1802 = vld [vmem:[#allocation2 + $0x145] sm:$0xff]
  %v1803 = vld [vmem:[#allocation2 + $0x14d] sm:$0xff]
  %v1804 = vld [vmem:[#allocation2 + $0x155] sm:$0xff]
  %v1805 = vld [vmem:[#allocation2 + $0x13e] sm:$0xff]
  %v1806 = vld [vmem:[#allocation2 + $0x146] sm:$0xff]
  %v1807 = vld [vmem:[#allocation2 + $0x14e] sm:$0xff]
  %v1808 = vld [vmem:[#allocation2 + $0x156] sm:$0xff]
  %1809 = vrot.lane.b32.xlu0 %v1380, 16
  %v1810 = vpop.permute.xlu0 %1809
  %1811 = vrot.lane.b32.xlu0 %v1381, 16
  %v1812 = vpop.permute.xlu0 %1811
  %1813 = vrot.lane.b32.xlu0 %v1382, 16
  %v1814 = vpop.permute.xlu0 %1813
  %1815 = vrot.lane.b32.xlu0 %v1383, 16
  %v1816 = vpop.permute.xlu0 %1815
  %1821 = vrot.lane.b32.xlu0 %v1384, 32
  %v1822 = vpop.permute.xlu0 %1821
  %1823 = vrot.lane.b32.xlu0 %v1385, 32
  %v1824 = vpop.permute.xlu0 %1823
  %1825 = vrot.lane.b32.xlu0 %v1386, 32
  %v1826 = vpop.permute.xlu0 %1825
  %1827 = vrot.lane.b32.xlu0 %v1387, 32
  %v1828 = vpop.permute.xlu0 %1827
  %1833 = vrot.lane.b32.xlu0 %v1388, 48
  %v1834 = vpop.permute.xlu0 %1833
  %1835 = vrot.lane.b32.xlu0 %v1389, 48
  %v1836 = vpop.permute.xlu0 %1835
  %1837 = vrot.lane.b32.xlu0 %v1390, 48
  %v1838 = vpop.permute.xlu0 %1837
  %1839 = vrot.lane.b32.xlu0 %v1391, 48
  %v1840 = vpop.permute.xlu0 %1839
  %1849 = vrot.lane.b32.xlu0 %v1392, 64
  %v1850 = vpop.permute.xlu0 %1849
  %1851 = vrot.lane.b32.xlu0 %v1393, 64
  %v1852 = vpop.permute.xlu0 %1851
  %1853 = vrot.lane.b32.xlu0 %v1394, 64
  %v1854 = vpop.permute.xlu0 %1853
  %1855 = vrot.lane.b32.xlu0 %v1395, 64
  %v1856 = vpop.permute.xlu0 %1855
  %1861 = vrot.lane.b32.xlu0 %v1396, 80
  %v1862 = vpop.permute.xlu0 %1861
  %1863 = vrot.lane.b32.xlu0 %v1397, 80
  %v1864 = vpop.permute.xlu0 %1863
  %1865 = vrot.lane.b32.xlu0 %v1398, 80
  %v1866 = vpop.permute.xlu0 %1865
  %1867 = vrot.lane.b32.xlu0 %v1399, 80
  %v1868 = vpop.permute.xlu0 %1867
  %1873 = vrot.lane.b32.xlu0 %v1400, 96
  %v1874 = vpop.permute.xlu0 %1873
  %1875 = vrot.lane.b32.xlu0 %v1401, 96
  %v1876 = vpop.permute.xlu0 %1875
  %1877 = vrot.lane.b32.xlu0 %v1402, 96
  %v1878 = vpop.permute.xlu0 %1877
  %1879 = vrot.lane.b32.xlu0 %v1403, 96
  %v1880 = vpop.permute.xlu0 %1879
  %1885 = vrot.lane.b32.xlu0 %v1404, 112
  %v1886 = vpop.permute.xlu0 %1885
  %1887 = vrot.lane.b32.xlu0 %v1405, 112
  %v1888 = vpop.permute.xlu0 %1887
  %1889 = vrot.lane.b32.xlu0 %v1406, 112
  %v1890 = vpop.permute.xlu0 %1889
  %1891 = vrot.lane.b32.xlu0 %v1407, 112
  %v1892 = vpop.permute.xlu0 %1891
  %1897 = vrot.lane.b32.xlu0 %v1412, 16
  %v1898 = vpop.permute.xlu0 %1897
  %1899 = vrot.lane.b32.xlu0 %v1413, 16
  %v1900 = vpop.permute.xlu0 %1899
  %1901 = vrot.lane.b32.xlu0 %v1414, 16
  %v1902 = vpop.permute.xlu0 %1901
  %1903 = vrot.lane.b32.xlu0 %v1415, 16
  %v1904 = vpop.permute.xlu0 %1903
  %1909 = vrot.lane.b32.xlu0 %v1416, 32
  %v1910 = vpop.permute.xlu0 %1909
  %1911 = vrot.lane.b32.xlu0 %v1417, 32
  %v1912 = vpop.permute.xlu0 %1911
  %1913 = vrot.lane.b32.xlu0 %v1418, 32
  %v1914 = vpop.permute.xlu0 %1913
  %1915 = vrot.lane.b32.xlu0 %v1419, 32
  %v1916 = vpop.permute.xlu0 %1915
  %1921 = vrot.lane.b32.xlu0 %v1420, 48
  %v1922 = vpop.permute.xlu0 %1921
  %1923 = vrot.lane.b32.xlu0 %v1421, 48
  %v1924 = vpop.permute.xlu0 %1923
  %1925 = vrot.lane.b32.xlu0 %v1422, 48
  %v1926 = vpop.permute.xlu0 %1925
  %1927 = vrot.lane.b32.xlu0 %v1423, 48
  %v1928 = vpop.permute.xlu0 %1927
  %1937 = vrot.lane.b32.xlu0 %v1793, 64
  %v1938 = vpop.permute.xlu0 %1937
  %1939 = vrot.lane.b32.xlu0 %v1794, 64
  %v1940 = vpop.permute.xlu0 %1939
  %1941 = vrot.lane.b32.xlu0 %v1795, 64
  %v1942 = vpop.permute.xlu0 %1941
  %1943 = vrot.lane.b32.xlu0 %v1796, 64
  %v1944 = vpop.permute.xlu0 %1943
  %1953 = vrot.lane.b32.xlu0 %v1797, 80
  %v1954 = vpop.permute.xlu0 %1953
  %1955 = vrot.lane.b32.xlu0 %v1798, 80
  %v1956 = vpop.permute.xlu0 %1955
  %1957 = vrot.lane.b32.xlu0 %v1799, 80
  %v1958 = vpop.permute.xlu0 %1957
  %1959 = vrot.lane.b32.xlu0 %v1800, 80
  %v1960 = vpop.permute.xlu0 %1959
  %1969 = vrot.lane.b32.xlu0 %v1801, 96
  %v1970 = vpop.permute.xlu0 %1969
  %1971 = vrot.lane.b32.xlu0 %v1802, 96
  %v1972 = vpop.permute.xlu0 %1971
  %1973 = vrot.lane.b32.xlu0 %v1803, 96
  %v1974 = vpop.permute.xlu0 %1973
  %1975 = vrot.lane.b32.xlu0 %v1804, 96
  %v1976 = vpop.permute.xlu0 %1975
  %1985 = vrot.lane.b32.xlu0 %v1805, 112
  %v1986 = vpop.permute.xlu0 %1985
  %1987 = vrot.lane.b32.xlu0 %v1806, 112
  %v1988 = vpop.permute.xlu0 %1987
  %1989 = vrot.lane.b32.xlu0 %v1807, 112
  %v1990 = vpop.permute.xlu0 %1989
  %1991 = vrot.lane.b32.xlu0 %v1808, 112
  %v1992 = vpop.permute.xlu0 %1991
  %v1997 = vsel %vm488, %v1376, %v1810
  %v1998 = vsel %vm488, %v1377, %v1812
  %v1999 = vsel %vm488, %v1378, %v1814
  %v2000 = vsel %vm488, %v1379, %v1816
  %v2001 = vsel %vm825, %v1997, %v1822
  %v2002 = vsel %vm825, %v1998, %v1824
  %v2003 = vsel %vm825, %v1999, %v1826
  %v2004 = vsel %vm825, %v2000, %v1828
  %v2005 = vsel %vm830, %v2001, %v1834
  %v2006 = vsel %vm830, %v2002, %v1836
  %v2007 = vsel %vm830, %v2003, %v1838
  %v2008 = vsel %vm830, %v2004, %v1840
  %v2009 = vsel %vm835, %v2005, %v1850
  %v2010 = vsel %vm835, %v2006, %v1852
  %v2011 = vsel %vm835, %v2007, %v1854
  %v2012 = vsel %vm835, %v2008, %v1856
  %v2013 = vsel %vm840, %v2009, %v1862
  %v2014 = vsel %vm840, %v2010, %v1864
  %v2015 = vsel %vm840, %v2011, %v1866
  %v2016 = vsel %vm840, %v2012, %v1868
  %v2017 = vsel %vm845, %v2013, %v1874
  %v2018 = vsel %vm845, %v2014, %v1876
  %v2019 = vsel %vm845, %v2015, %v1878
  %v2020 = vsel %vm845, %v2016, %v1880
  %v2021 = vsel %vm850, %v2017, %v1886
  %v2022 = vsel %vm850, %v2018, %v1888
  %v2023 = vsel %vm850, %v2019, %v1890
  %v2024 = vsel %vm850, %v2020, %v1892
  %v2025 = vsel %vm488, %v1408, %v1898
  %v2026 = vsel %vm488, %v1409, %v1900
  %v2027 = vsel %vm488, %v1410, %v1902
  %v2028 = vsel %vm488, %v1411, %v1904
  %v2029 = vsel %vm825, %v2025, %v1910
  %v2030 = vsel %vm825, %v2026, %v1912
  %v2031 = vsel %vm825, %v2027, %v1914
  %v2032 = vsel %vm825, %v2028, %v1916
  %v2033 = vsel %vm830, %v2029, %v1922
  %v2034 = vsel %vm830, %v2030, %v1924
  %v2035 = vsel %vm830, %v2031, %v1926
  %v2036 = vsel %vm830, %v2032, %v1928
  %v2037 = vsel %vm835, %v2033, %v1938
  %v2038 = vsel %vm835, %v2034, %v1940
  %v2039 = vsel %vm835, %v2035, %v1942
  %v2040 = vsel %vm835, %v2036, %v1944
  %v2041 = vsel %vm840, %v2037, %v1954
  %v2042 = vsel %vm840, %v2038, %v1956
  %v2043 = vsel %vm840, %v2039, %v1958
  %v2044 = vsel %vm840, %v2040, %v1960
  %v2045 = vsel %vm845, %v2041, %v1970
  %v2046 = vsel %vm845, %v2042, %v1972
  %v2047 = vsel %vm845, %v2043, %v1974
  %v2048 = vsel %vm845, %v2044, %v1976
  %v2049 = vsel %vm850, %v2045, %v1986
  %v2050 = vsel %vm850, %v2046, %v1988
  %v2051 = vsel %vm850, %v2047, %v1990
  %v2052 = vsel %vm850, %v2048, %v1992
  %2053 = vmatprep.subr.mxu0 0.0
  %2054 = vmatpush1.msra.mxu0 %v883
  %2055 = vmatprep.subr.mxu0 0.0
  %2056 = vmatpush1.msra.mxu0 %v884
  %2057 = vmatprep.subr.mxu0 0.0
  %2058 = vmatpush1.msra.mxu0 %v885
  %2059 = vmatprep.subr.mxu0 0.0
  %2060 = vmatpush1.msra.mxu0 %v886
  %2061 = vmatprep.subr.mxu0 0.0
  %2062 = vmatpush1.msra.mxu0 %v887
  %2063 = vmatprep.subr.mxu0 0.0
  %2064 = vmatpush1.msra.mxu0 %v888
  %2065 = vmatprep.subr.mxu0 0.0
  %2066 = vmatpush1.msra.mxu0 %v889
  %2067 = vmatprep.subr.mxu0 0.0
  %2068 = vmatpush1.msra.mxu0 %v890
  %2069 = vmatprep.subr.mxu0 0.0
  %2070 = vmatpush1.msra.mxu0 %v891
  %2071 = vmatprep.subr.mxu0 0.0
  %2072 = vmatpush1.msra.mxu0 %v892
  %2073 = vmatprep.subr.mxu0 0.0
  %2074 = vmatpush1.msra.mxu0 %v893
  %2075 = vmatprep.subr.mxu0 0.0
  %2076 = vmatpush1.msra.mxu0 %v894
  %2077 = vmatprep.subr.mxu0 0.0
  %2078 = vmatpush1.msra.mxu0 %v895
  %2079 = vmatprep.subr.mxu0 0.0
  %2080 = vmatpush1.msra.mxu0 %v896
  %2081 = vmatprep.subr.mxu0 0.0
  %2082 = vmatpush1.msra.mxu0 %v897
  %2083 = vmatprep.subr.mxu0 0.0
  %2084 = vmatpush1.msra.mxu0 %v898
  %2085 = vmatprep.subr.mxu0 0.0
  %2086 = vmatpush1.msra.mxu0 %v899
  %2087 = vmatprep.subr.mxu0 0.0
  %2088 = vmatpush1.msra.mxu0 %v900
  %2089 = vmatprep.subr.mxu0 0.0
  %2090 = vmatpush1.msra.mxu0 %v901
  %2091 = vmatprep.subr.mxu0 0.0
  %2092 = vmatpush1.msra.mxu0 %v902
  %2093 = vmatprep.subr.mxu0 0.0
  %2094 = vmatpush1.msra.mxu0 %v903
  %2095 = vmatprep.subr.mxu0 0.0
  %2096 = vmatpush1.msra.mxu0 %v904
  %2097 = vmatprep.subr.mxu0 0.0
  %2098 = vmatpush1.msra.mxu0 %v905
  %2099 = vmatprep.subr.mxu0 0.0
  %2100 = vmatpush1.msra.mxu0 %v906
  %2101 = vmatprep.subr.mxu0 0.0
  %2102 = vmatpush1.msra.mxu0 %v907
  %2103 = vmatprep.subr.mxu0 0.0
  %2104 = vmatpush1.msra.mxu0 %v908
  %2105 = vmatprep.subr.mxu0 0.0
  %2106 = vmatpush1.msra.mxu0 %v909
  %2107 = vmatprep.subr.mxu0 0.0
  %2108 = vmatpush1.msra.mxu0 %v910
  %2109 = vmatprep.subr.mxu0 0.0
  %2110 = vmatpush1.msra.mxu0 %v911
  %2111 = vmatprep.subr.mxu0 0.0
  %2112 = vmatpush1.msra.mxu0 %v912
  %2113 = vmatprep.subr.mxu0 0.0
  %2114 = vmatpush1.msra.mxu0 %v913
  %2115 = vmatprep.subr.mxu0 0.0
  %2116 = vmatpush1.msra.mxu0 %v914
  %2117 = vmatprep.mubr.f32.mxu0 %v2049
  %2118 = vmatmul.mubr.f32.gmra.mrb[0].mxu0 %v2021
  %v2119 = vpop.f32.mrb[0].mxu0
  %v2120 = vadd.f32 %v920, %v2119
  %v2121 = vpop.f32.mrb[0].mxu0
  %2122 = vmatprep.mubr.f32.mxu0 %v2050
  %2123 = vmatmul.mubr.f32.gmra.mrb[0].mxu0 %v2022
  %v2124 = vpop.f32.mrb[0].mxu0
  %v2125 = vadd.f32 %v920, %v2124
  %v2126 = vpop.f32.mrb[0].mxu0
  %2127 = vmatprep.mubr.f32.mxu0 %v2051
  %2128 = vmatmul.mubr.f32.gmra.mrb[0].mxu0 %v2023
  %v2129 = vpop.f32.mrb[0].mxu0
  %v2130 = vadd.f32 %v920, %v2129
  %v2131 = vpop.f32.mrb[0].mxu0
  %2132 = vmatprep.mubr.f32.mxu0 %v2052
  %2133 = vmatmul.mubr.f32.gmra.mrb[0].mxu0 %v2024
  %v2134 = vpop.f32.mrb[0].mxu0
  %v2135 = vadd.f32 %v920, %v2134
  %v2136 = vpop.f32.mrb[0].mxu0
  %2137 = vdwg.mxu0
  %v2138 = vmax.f32 %v2120, 0.0
  %v2139 = vmax.f32 %v2125, 0.0
  %v2140 = vmax.f32 %v2130, 0.0
  %v2141 = vmax.f32 %v2135, 0.0
  %2146 = vrot.lane.b32.xlu0 %v1356, 32
  %v2147 = vpop.permute.xlu0 %2146
  %2148 = vrot.lane.b32.xlu0 %v1357, 32
  %v2149 = vpop.permute.xlu0 %2148
  %2150 = vrot.lane.b32.xlu0 %v1358, 32
  %v2151 = vpop.permute.xlu0 %2150
  %2152 = vrot.lane.b32.xlu0 %v1359, 32
  %v2153 = vpop.permute.xlu0 %2152
  %2162 = vrot.lane.b32.xlu0 %v1789, 64
  %v2163 = vpop.permute.xlu0 %2162
  %2164 = vrot.lane.b32.xlu0 %v1790, 64
  %v2165 = vpop.permute.xlu0 %2164
  %2166 = vrot.lane.b32.xlu0 %v1791, 64
  %v2167 = vpop.permute.xlu0 %2166
  %2168 = vrot.lane.b32.xlu0 %v1792, 64
  %v2169 = vpop.permute.xlu0 %2168
  %2178 = vrot.lane.b32.xlu0 %v2138, 96
  %v2179 = vpop.permute.xlu0 %2178
  %2180 = vrot.lane.b32.xlu0 %v2139, 96
  %v2181 = vpop.permute.xlu0 %2180
  %2182 = vrot.lane.b32.xlu0 %v2140, 96
  %v2183 = vpop.permute.xlu0 %2182
  %2184 = vrot.lane.b32.xlu0 %v2141, 96
  %v2185 = vpop.permute.xlu0 %2184
  %v2190 = vsel %vm825, %v1007, %v2147
  %v2191 = vsel %vm825, %v1008, %v2149
  %v2192 = vsel %vm825, %v1009, %v2151
  %v2193 = vsel %vm825, %v1010, %v2153
  %v2194 = vsel %vm835, %v2190, %v2163
  %v2195 = vsel %vm835, %v2191, %v2165
  %v2196 = vsel %vm835, %v2192, %v2167
  %v2197 = vsel %vm835, %v2193, %v2169
  %v2198 = vsel %vm845, %v2194, %v2179
  %v2199 = vsel %vm845, %v2195, %v2181
  %v2200 = vsel %vm845, %v2196, %v2183
  %v2201 = vsel %vm845, %v2197, %v2185
  %v2202 = vld [vmem:[%s5] sm:$0xff]
  %v2203 = vld [vmem:[%s5 + $0x8] sm:$0xff]
  %v2204 = vld [vmem:[%s5 + $0x10] sm:$0xff]
  %v2205 = vld [vmem:[%s5 + $0x18] sm:$0xff]
  %v2206 = vld [vmem:[%s5 + $0x20] sm:$0xff]
  %v2207 = vld [vmem:[%s5 + $0x28] sm:$0xff]
  %v2208 = vld [vmem:[%s5 + $0x30] sm:$0xff]
  %v2209 = vld [vmem:[%s5 + $0x38] sm:$0xff]
  %v2210 = vld [vmem:[%s5 + $0x40] sm:$0xff]
  %v2211 = vld [vmem:[%s5 + $0x48] sm:$0xff]
  %v2212 = vld [vmem:[%s5 + $0x50] sm:$0xff]
  %v2213 = vld [vmem:[%s5 + $0x58] sm:$0xff]
  %v2214 = vld [vmem:[%s5 + $0x60] sm:$0xff]
  %v2215 = vld [vmem:[%s5 + $0x68] sm:$0xff]
  %v2216 = vld [vmem:[%s5 + $0x70] sm:$0xff]
  %v2217 = vld [vmem:[%s5 + $0x78] sm:$0xff]
  %v2218 = vld [vmem:[%s5 + $0x80] sm:$0xff]
  %v2219 = vld [vmem:[%s5 + $0x88] sm:$0xff]
  %v2220 = vld [vmem:[%s5 + $0x90] sm:$0xff]
  %v2221 = vld [vmem:[%s5 + $0x98] sm:$0xff]
  %v2222 = vld [vmem:[%s5 + $0xa0] sm:$0xff]
  %v2223 = vld [vmem:[%s5 + $0xa8] sm:$0xff]
  %v2224 = vld [vmem:[%s5 + $0xb0] sm:$0xff]
  %v2225 = vld [vmem:[%s5 + $0xb8] sm:$0xff]
  %v2226 = vld [vmem:[%s5 + $0xc0] sm:$0xff]
  %v2227 = vld [vmem:[%s5 + $0xc8] sm:$0xff]
  %v2228 = vld [vmem:[%s5 + $0xd0] sm:$0xff]
  %v2229 = vld [vmem:[%s5 + $0xd8] sm:$0xff]
  %v2230 = vld [vmem:[%s5 + $0xe0] sm:$0xff]
  %v2231 = vld [vmem:[%s5 + $0xe8] sm:$0xff]
  %v2232 = vld [vmem:[%s5 + $0xf0] sm:$0xff]
  %v2233 = vld [vmem:[%s5 + $0xf8] sm:$0xff]
  %v2234 = vld [vmem:[%s6] sm:$0xff]
  %v2235 = vld [vmem:[%s6 + $0x8] sm:$0xff]
  %v2236 = vld [vmem:[%s6 + $0x10] sm:$0xff]
  %v2237 = vld [vmem:[%s6 + $0x18] sm:$0xff]
  %v2238 = vld [vmem:[%s6 + $0x20] sm:$0xff]
  %v2239 = vld [vmem:[%s6 + $0x28] sm:$0xff]
  %v2240 = vld [vmem:[%s6 + $0x30] sm:$0xff]
  %v2241 = vld [vmem:[%s6 + $0x38] sm:$0xff]
  %v2242 = vld [vmem:[%s6 + $0x40] sm:$0xff]
  %v2243 = vld [vmem:[%s6 + $0x48] sm:$0xff]
  %v2244 = vld [vmem:[%s6 + $0x50] sm:$0xff]
  %v2245 = vld [vmem:[%s6 + $0x58] sm:$0xff]
  %v2246 = vld [vmem:[%s6 + $0x60] sm:$0xff]
  %v2247 = vld [vmem:[%s6 + $0x68] sm:$0xff]
  %v2248 = vld [vmem:[%s6 + $0x70] sm:$0xff]
  %v2249 = vld [vmem:[%s6 + $0x78] sm:$0xff]
  %v2250 = vld [vmem:[%s6 + $0x80] sm:$0xff]
  %v2251 = vld [vmem:[%s6 + $0x88] sm:$0xff]
  %v2252 = vld [vmem:[%s6 + $0x90] sm:$0xff]
  %v2253 = vld [vmem:[%s6 + $0x98] sm:$0xff]
  %v2254 = vld [vmem:[%s6 + $0xa0] sm:$0xff]
  %v2255 = vld [vmem:[%s6 + $0xa8] sm:$0xff]
  %v2256 = vld [vmem:[%s6 + $0xb0] sm:$0xff]
  %v2257 = vld [vmem:[%s6 + $0xb8] sm:$0xff]
  %v2258 = vld [vmem:[%s6 + $0xc0] sm:$0xff]
  %v2259 = vld [vmem:[%s6 + $0xc8] sm:$0xff]
  %v2260 = vld [vmem:[%s6 + $0xd0] sm:$0xff]
  %v2261 = vld [vmem:[%s6 + $0xd8] sm:$0xff]
  %v2262 = vld [vmem:[%s6 + $0xe0] sm:$0xff]
  %v2263 = vld [vmem:[%s6 + $0xe8] sm:$0xff]
  %v2264 = vld [vmem:[%s6 + $0xf0] sm:$0xff]
  %v2265 = vld [vmem:[%s6 + $0xf8] sm:$0xff]
  %2267 = vset.pattern.permute.xlu0 0
  %2268 = vperm.xlu0 %2267, %v2234
  %v2269 = vpop.permute.xlu0 %2268
  %2272 = vset.pattern.permute.xlu0 0
  %2273 = vperm.xlu0 %2272, %v2235
  %v2274 = vpop.permute.xlu0 %2273
  %2277 = vset.pattern.permute.xlu0 0
  %2278 = vperm.xlu0 %2277, %v2236
  %v2279 = vpop.permute.xlu0 %2278
  %2282 = vset.pattern.permute.xlu0 0
  %2283 = vperm.xlu0 %2282, %v2237
  %v2284 = vpop.permute.xlu0 %2283
  %2287 = vset.pattern.permute.xlu0 0
  %2288 = vperm.xlu0 %2287, %v2238
  %v2289 = vpop.permute.xlu0 %2288
  %2292 = vset.pattern.permute.xlu0 0
  %2293 = vperm.xlu0 %2292, %v2239
  %v2294 = vpop.permute.xlu0 %2293
  %2297 = vset.pattern.permute.xlu0 0
  %2298 = vperm.xlu0 %2297, %v2240
  %v2299 = vpop.permute.xlu0 %2298
  %2302 = vset.pattern.permute.xlu0 0
  %2303 = vperm.xlu0 %2302, %v2241
  %v2304 = vpop.permute.xlu0 %2303
  %2307 = vset.pattern.permute.xlu0 0
  %2308 = vperm.xlu0 %2307, %v2242
  %v2309 = vpop.permute.xlu0 %2308
  %2312 = vset.pattern.permute.xlu0 0
  %2313 = vperm.xlu0 %2312, %v2243
  %v2314 = vpop.permute.xlu0 %2313
  %2317 = vset.pattern.permute.xlu0 0
  %2318 = vperm.xlu0 %2317, %v2244
  %v2319 = vpop.permute.xlu0 %2318
  %2322 = vset.pattern.permute.xlu0 0
  %2323 = vperm.xlu0 %2322, %v2245
  %v2324 = vpop.permute.xlu0 %2323
  %2327 = vset.pattern.permute.xlu0 0
  %2328 = vperm.xlu0 %2327, %v2246
  %v2329 = vpop.permute.xlu0 %2328
  %2332 = vset.pattern.permute.xlu0 0
  %2333 = vperm.xlu0 %2332, %v2247
  %v2334 = vpop.permute.xlu0 %2333
  %2337 = vset.pattern.permute.xlu0 0
  %2338 = vperm.xlu0 %2337, %v2248
  %v2339 = vpop.permute.xlu0 %2338
  %2342 = vset.pattern.permute.xlu0 0
  %2343 = vperm.xlu0 %2342, %v2249
  %v2344 = vpop.permute.xlu0 %2343
  %2347 = vset.pattern.permute.xlu0 0
  %2348 = vperm.xlu0 %2347, %v2250
  %v2349 = vpop.permute.xlu0 %2348
  %2352 = vset.pattern.permute.xlu0 0
  %2353 = vperm.xlu0 %2352, %v2251
  %v2354 = vpop.permute.xlu0 %2353
  %2357 = vset.pattern.permute.xlu0 0
  %2358 = vperm.xlu0 %2357, %v2252
  %v2359 = vpop.permute.xlu0 %2358
  %2362 = vset.pattern.permute.xlu0 0
  %2363 = vperm.xlu0 %2362, %v2253
  %v2364 = vpop.permute.xlu0 %2363
  %2367 = vset.pattern.permute.xlu0 0
  %2368 = vperm.xlu0 %2367, %v2254
  %v2369 = vpop.permute.xlu0 %2368
  %2372 = vset.pattern.permute.xlu0 0
  %2373 = vperm.xlu0 %2372, %v2255
  %v2374 = vpop.permute.xlu0 %2373
  %2377 = vset.pattern.permute.xlu0 0
  %2378 = vperm.xlu0 %2377, %v2256
  %v2379 = vpop.permute.xlu0 %2378
  %2382 = vset.pattern.permute.xlu0 0
  %2383 = vperm.xlu0 %2382, %v2257
  %v2384 = vpop.permute.xlu0 %2383
  %2387 = vset.pattern.permute.xlu0 0
  %2388 = vperm.xlu0 %2387, %v2258
  %v2389 = vpop.permute.xlu0 %2388
  %2392 = vset.pattern.permute.xlu0 0
  %2393 = vperm.xlu0 %2392, %v2259
  %v2394 = vpop.permute.xlu0 %2393
  %2397 = vset.pattern.permute.xlu0 0
  %2398 = vperm.xlu0 %2397, %v2260
  %v2399 = vpop.permute.xlu0 %2398
  %2402 = vset.pattern.permute.xlu0 0
  %2403 = vperm.xlu0 %2402, %v2261
  %v2404 = vpop.permute.xlu0 %2403
  %2407 = vset.pattern.permute.xlu0 0
  %2408 = vperm.xlu0 %2407, %v2262
  %v2409 = vpop.permute.xlu0 %2408
  %2412 = vset.pattern.permute.xlu0 0
  %2413 = vperm.xlu0 %2412, %v2263
  %v2414 = vpop.permute.xlu0 %2413
  %2417 = vset.pattern.permute.xlu0 0
  %2418 = vperm.xlu0 %2417, %v2264
  %v2419 = vpop.permute.xlu0 %2418
  %2422 = vset.pattern.permute.xlu0 0
  %2423 = vperm.xlu0 %2422, %v2265
  %v2424 = vpop.permute.xlu0 %2423
  %v2427 = vsel %vm825, %v2202, 0
  %v2430 = vsel %vm825, %v2203, 0
  %v2433 = vsel %vm825, %v2204, 0
  %v2436 = vsel %vm825, %v2205, 0
  %v2439 = vsel %vm825, %v2206, 0
  %v2442 = vsel %vm825, %v2207, 0
  %v2445 = vsel %vm825, %v2208, 0
  %v2448 = vsel %vm825, %v2209, 0
  %v2451 = vsel %vm825, %v2210, 0
  %v2454 = vsel %vm825, %v2211, 0
  %v2457 = vsel %vm825, %v2212, 0
  %v2460 = vsel %vm825, %v2213, 0
  %v2463 = vsel %vm825, %v2214, 0
  %v2466 = vsel %vm825, %v2215, 0
  %v2469 = vsel %vm825, %v2216, 0
  %v2472 = vsel %vm825, %v2217, 0
  %v2475 = vsel %vm825, %v2218, 0
  %v2478 = vsel %vm825, %v2219, 0
  %v2481 = vsel %vm825, %v2220, 0
  %v2484 = vsel %vm825, %v2221, 0
  %v2487 = vsel %vm825, %v2222, 0
  %v2490 = vsel %vm825, %v2223, 0
  %v2493 = vsel %vm825, %v2224, 0
  %v2496 = vsel %vm825, %v2225, 0
  %v2499 = vsel %vm825, %v2226, 0
  %v2502 = vsel %vm825, %v2227, 0
  %v2505 = vsel %vm825, %v2228, 0
  %v2508 = vsel %vm825, %v2229, 0
  %v2511 = vsel %vm825, %v2230, 0
  %v2514 = vsel %vm825, %v2231, 0
  %v2517 = vsel %vm825, %v2232, 0
  %v2520 = vsel %vm825, %v2233, 0
  %2522 = vmatprep.subr.mxu0 0.0
  %2523 = vmatpush1.msra.mxu0 %v2198
  %2524 = vmatprep.subr.mxu0 0.0
  %2525 = vmatpush1.msra.mxu0 %v2199
  %2526 = vmatprep.subr.mxu0 0.0
  %2527 = vmatpush1.msra.mxu0 %v2200
  %2528 = vmatprep.subr.mxu0 0.0
  %2529 = vmatpush1.msra.mxu0 %v2201
  %2530 = vmatprep.subr.mxu0 0.0
  %2531 = vmatpush1.msra.mxu0 0.0
  %2532 = vmatprep.subr.mxu0 0.0
  %2533 = vmatpush1.msra.mxu0 0.0
  %2534 = vmatprep.subr.mxu0 0.0
  %2535 = vmatpush1.msra.mxu0 0.0
  %2536 = vmatprep.subr.mxu0 0.0
  %2537 = vmatpush1.msra.mxu0 0.0
  %2538 = vmatprep.subr.mxu0 0.0
  %2539 = vmatpush1.msra.mxu0 0.0
  %2540 = vmatprep.subr.mxu0 0.0
  %2541 = vmatpush1.msra.mxu0 0.0
  %2542 = vmatprep.subr.mxu0 0.0
  %2543 = vmatpush1.msra.mxu0 0.0
  %2544 = vmatprep.subr.mxu0 0.0
  %2545 = vmatpush1.msra.mxu0 0.0
  %2546 = vmatprep.subr.mxu0 0.0
  %2547 = vmatpush1.msra.mxu0 0.0
  %2548 = vmatprep.subr.mxu0 0.0
  %2549 = vmatpush1.msra.mxu0 0.0
  %2550 = vmatprep.subr.mxu0 0.0
  %2551 = vmatpush1.msra.mxu0 0.0
  %2552 = vmatprep.subr.mxu0 0.0
  %2553 = vmatpush1.msra.mxu0 0.0
  %2554 = vmatprep.subr.mxu0 0.0
  %2555 = vmatpush1.msra.mxu0 0.0
  %2556 = vmatprep.subr.mxu0 0.0
  %2557 = vmatpush1.msra.mxu0 0.0
  %2558 = vmatprep.subr.mxu0 0.0
  %2559 = vmatpush1.msra.mxu0 0.0
  %2560 = vmatprep.subr.mxu0 0.0
  %2561 = vmatpush1.msra.mxu0 0.0
  %2562 = vmatprep.subr.mxu0 0.0
  %2563 = vmatpush1.msra.mxu0 0.0
  %2564 = vmatprep.subr.mxu0 0.0
  %2565 = vmatpush1.msra.mxu0 0.0
  %2566 = vmatprep.subr.mxu0 0.0
  %2567 = vmatpush1.msra.mxu0 0.0
  %2568 = vmatprep.subr.mxu0 0.0
  %2569 = vmatpush1.msra.mxu0 0.0
  %2570 = vmatprep.subr.mxu0 0.0
  %2571 = vmatpush1.msra.mxu0 0.0
  %2572 = vmatprep.subr.mxu0 0.0
  %2573 = vmatpush1.msra.mxu0 0.0
  %2574 = vmatprep.subr.mxu0 0.0
  %2575 = vmatpush1.msra.mxu0 0.0
  %2576 = vmatprep.subr.mxu0 0.0
  %2577 = vmatpush1.msra.mxu0 0.0
  %2578 = vmatprep.subr.mxu0 0.0
  %2579 = vmatpush1.msra.mxu0 0.0
  %2580 = vmatprep.subr.mxu0 0.0
  %2581 = vmatpush1.msra.mxu0 0.0
  %2582 = vmatprep.subr.mxu0 0.0
  %2583 = vmatpush1.msra.mxu0 0.0
  %2584 = vmatprep.subr.mxu0 0.0
  %2585 = vmatpush1.msra.mxu0 0.0
  %2586 = vmatprep.mubr.f32.mxu0 0.0
  %2587 = vmatmul.mubr.f32.gmra.mrb[0].mxu0 %v2427
  %v2588 = vpop.f32.mrb[0].mxu0
  %v2589 = vadd.f32 %v2269, %v2588
  %v2590 = vpop.f32.mrb[0].mxu0
  %2591 = vmatprep.mubr.f32.mxu0 0.0
  %2592 = vmatmul.mubr.f32.gmra.mrb[0].mxu0 %v2430
  %v2593 = vpop.f32.mrb[0].mxu0
  %v2594 = vadd.f32 %v2274, %v2593
  %v2595 = vpop.f32.mrb[0].mxu0
  %2596 = vmatprep.mubr.f32.mxu0 0.0
  %2597 = vmatmul.mubr.f32.gmra.mrb[0].mxu0 %v2433
  %v2598 = vpop.f32.mrb[0].mxu0
  %v2599 = vadd.f32 %v2279, %v2598
  %v2600 = vpop.f32.mrb[0].mxu0
  %2601 = vmatprep.mubr.f32.mxu0 0.0
  %2602 = vmatmul.mubr.f32.gmra.mrb[0].mxu0 %v2436
  %v2603 = vpop.f32.mrb[0].mxu0
  %v2604 = vadd.f32 %v2284, %v2603
  %v2605 = vpop.f32.mrb[0].mxu0
  %2606 = vmatprep.mubr.f32.mxu0 0.0
  %2607 = vmatmul.mubr.f32.gmra.mrb[0].mxu0 %v2439
  %v2608 = vpop.f32.mrb[0].mxu0
  %v2609 = vadd.f32 %v2289, %v2608
  %v2610 = vpop.f32.mrb[0].mxu0
  %2611 = vmatprep.mubr.f32.mxu0 0.0
  %2612 = vmatmul.mubr.f32.gmra.mrb[0].mxu0 %v2442
  %v2613 = vpop.f32.mrb[0].mxu0
  %v2614 = vadd.f32 %v2294, %v2613
  %v2615 = vpop.f32.mrb[0].mxu0
  %2616 = vmatprep.mubr.f32.mxu0 0.0
  %2617 = vmatmul.mubr.f32.gmra.mrb[0].mxu0 %v2445
  %v2618 = vpop.f32.mrb[0].mxu0
  %v2619 = vadd.f32 %v2299, %v2618
  %v2620 = vpop.f32.mrb[0].mxu0
  %2621 = vmatprep.mubr.f32.mxu0 0.0
  %2622 = vmatmul.mubr.f32.gmra.mrb[0].mxu0 %v2448
  %v2623 = vpop.f32.mrb[0].mxu0
  %v2624 = vadd.f32 %v2304, %v2623
  %v2625 = vpop.f32.mrb[0].mxu0
  %2626 = vmatprep.mubr.f32.mxu0 0.0
  %2627 = vmatmul.mubr.f32.gmra.mrb[0].mxu0 %v2451
  %v2628 = vpop.f32.mrb[0].mxu0
  %v2629 = vadd.f32 %v2309, %v2628
  %v2630 = vpop.f32.mrb[0].mxu0
  %2631 = vmatprep.mubr.f32.mxu0 0.0
  %2632 = vmatmul.mubr.f32.gmra.mrb[0].mxu0 %v2454
  %v2633 = vpop.f32.mrb[0].mxu0
  %v2634 = vadd.f32 %v2314, %v2633
  %v2635 = vpop.f32.mrb[0].mxu0
  %2636 = vmatprep.mubr.f32.mxu0 0.0
  %2637 = vmatmul.mubr.f32.gmra.mrb[0].mxu0 %v2457
  %v2638 = vpop.f32.mrb[0].mxu0
  %v2639 = vadd.f32 %v2319, %v2638
  %v2640 = vpop.f32.mrb[0].mxu0
  %2641 = vmatprep.mubr.f32.mxu0 0.0
  %2642 = vmatmul.mubr.f32.gmra.mrb[0].mxu0 %v2460
  %v2643 = vpop.f32.mrb[0].mxu0
  %v2644 = vadd.f32 %v2324, %v2643
  %v2645 = vpop.f32.mrb[0].mxu0
  %2646 = vmatprep.mubr.f32.mxu0 0.0
  %2647 = vmatmul.mubr.f32.gmra.mrb[0].mxu0 %v2463
  %v2648 = vpop.f32.mrb[0].mxu0
  %v2649 = vadd.f32 %v2329, %v2648
  %v2650 = vpop.f32.mrb[0].mxu0
  %2651 = vmatprep.mubr.f32.mxu0 0.0
  %2652 = vmatmul.mubr.f32.gmra.mrb[0].mxu0 %v2466
  %v2653 = vpop.f32.mrb[0].mxu0
  %v2654 = vadd.f32 %v2334, %v2653
  %v2655 = vpop.f32.mrb[0].mxu0
  %2656 = vmatprep.mubr.f32.mxu0 0.0
  %2657 = vmatmul.mubr.f32.gmra.mrb[0].mxu0 %v2469
  %v2658 = vpop.f32.mrb[0].mxu0
  %v2659 = vadd.f32 %v2339, %v2658
  %v2660 = vpop.f32.mrb[0].mxu0
  %2661 = vmatprep.mubr.f32.mxu0 0.0
  %2662 = vmatmul.mubr.f32.gmra.mrb[0].mxu0 %v2472
  %v2663 = vpop.f32.mrb[0].mxu0
  %v2664 = vadd.f32 %v2344, %v2663
  %v2665 = vpop.f32.mrb[0].mxu0
  %2666 = vmatprep.mubr.f32.mxu0 0.0
  %2667 = vmatmul.mubr.f32.gmra.mrb[0].mxu0 %v2475
  %v2668 = vpop.f32.mrb[0].mxu0
  %v2669 = vadd.f32 %v2349, %v2668
  %v2670 = vpop.f32.mrb[0].mxu0
  %2671 = vmatprep.mubr.f32.mxu0 0.0
  %2672 = vmatmul.mubr.f32.gmra.mrb[0].mxu0 %v2478
  %v2673 = vpop.f32.mrb[0].mxu0
  %v2674 = vadd.f32 %v2354, %v2673
  %v2675 = vpop.f32.mrb[0].mxu0
  %2676 = vmatprep.mubr.f32.mxu0 0.0
  %2677 = vmatmul.mubr.f32.gmra.mrb[0].mxu0 %v2481
  %v2678 = vpop.f32.mrb[0].mxu0
  %v2679 = vadd.f32 %v2359, %v2678
  %v2680 = vpop.f32.mrb[0].mxu0
  %2681 = vmatprep.mubr.f32.mxu0 0.0
  %2682 = vmatmul.mubr.f32.gmra.mrb[0].mxu0 %v2484
  %v2683 = vpop.f32.mrb[0].mxu0
  %v2684 = vadd.f32 %v2364, %v2683
  %v2685 = vpop.f32.mrb[0].mxu0
  %2686 = vmatprep.mubr.f32.mxu0 0.0
  %2687 = vmatmul.mubr.f32.gmra.mrb[0].mxu0 %v2487
  %v2688 = vpop.f32.mrb[0].mxu0
  %v2689 = vadd.f32 %v2369, %v2688
  %v2690 = vpop.f32.mrb[0].mxu0
  %2691 = vmatprep.mubr.f32.mxu0 0.0
  %2692 = vmatmul.mubr.f32.gmra.mrb[0].mxu0 %v2490
  %v2693 = vpop.f32.mrb[0].mxu0
  %v2694 = vadd.f32 %v2374, %v2693
  %v2695 = vpop.f32.mrb[0].mxu0
  %2696 = vmatprep.mubr.f32.mxu0 0.0
  %2697 = vmatmul.mubr.f32.gmra.mrb[0].mxu0 %v2493
  %v2698 = vpop.f32.mrb[0].mxu0
  %v2699 = vadd.f32 %v2379, %v2698
  %v2700 = vpop.f32.mrb[0].mxu0
  %2701 = vmatprep.mubr.f32.mxu0 0.0
  %2702 = vmatmul.mubr.f32.gmra.mrb[0].mxu0 %v2496
  %v2703 = vpop.f32.mrb[0].mxu0
  %v2704 = vadd.f32 %v2384, %v2703
  %v2705 = vpop.f32.mrb[0].mxu0
  %2706 = vmatprep.mubr.f32.mxu0 0.0
  %2707 = vmatmul.mubr.f32.gmra.mrb[0].mxu0 %v2499
  %v2708 = vpop.f32.mrb[0].mxu0
  %v2709 = vadd.f32 %v2389, %v2708
  %v2710 = vpop.f32.mrb[0].mxu0
  %2711 = vmatprep.mubr.f32.mxu0 0.0
  %2712 = vmatmul.mubr.f32.gmra.mrb[0].mxu0 %v2502
  %v2713 = vpop.f32.mrb[0].mxu0
  %v2714 = vadd.f32 %v2394, %v2713
  %v2715 = vpop.f32.mrb[0].mxu0
  %2716 = vmatprep.mubr.f32.mxu0 0.0
  %2717 = vmatmul.mubr.f32.gmra.mrb[0].mxu0 %v2505
  %v2718 = vpop.f32.mrb[0].mxu0
  %v2719 = vadd.f32 %v2399, %v2718
  %v2720 = vpop.f32.mrb[0].mxu0
  %2721 = vmatprep.mubr.f32.mxu0 0.0
  %2722 = vmatmul.mubr.f32.gmra.mrb[0].mxu0 %v2508
  %v2723 = vpop.f32.mrb[0].mxu0
  %v2724 = vadd.f32 %v2404, %v2723
  %v2725 = vpop.f32.mrb[0].mxu0
  %2726 = vmatprep.mubr.f32.mxu0 0.0
  %2727 = vmatmul.mubr.f32.gmra.mrb[0].mxu0 %v2511
  %v2728 = vpop.f32.mrb[0].mxu0
  %v2729 = vadd.f32 %v2409, %v2728
  %v2730 = vpop.f32.mrb[0].mxu0
  %2731 = vmatprep.mubr.f32.mxu0 0.0
  %2732 = vmatmul.mubr.f32.gmra.mrb[0].mxu0 %v2514
  %v2733 = vpop.f32.mrb[0].mxu0
  %v2734 = vadd.f32 %v2414, %v2733
  %v2735 = vpop.f32.mrb[0].mxu0
  %2736 = vmatprep.mubr.f32.mxu0 0.0
  %2737 = vmatmul.mubr.f32.gmra.mrb[0].mxu0 %v2517
  %v2738 = vpop.f32.mrb[0].mxu0
  %v2739 = vadd.f32 %v2419, %v2738
  %v2740 = vpop.f32.mrb[0].mxu0
  %2741 = vmatprep.mubr.f32.mxu0 0.0
  %2742 = vmatmul.mubr.f32.gmra.mrb[0].mxu0 %v2520
  %v2743 = vpop.f32.mrb[0].mxu0
  %v2744 = vadd.f32 %v2424, %v2743
  %v2745 = vpop.f32.mrb[0].mxu0
  %2746 = vdwg.mxu0
  %v2747 = vmax.f32 %v2589, 0.0
  %v2748 = vmax.f32 %v2594, 0.0
  %v2749 = vmax.f32 %v2599, 0.0
  %v2750 = vmax.f32 %v2604, 0.0
  %v2751 = vmax.f32 %v2609, 0.0
  %v2752 = vmax.f32 %v2614, 0.0
  %v2753 = vmax.f32 %v2619, 0.0
  %v2754 = vmax.f32 %v2624, 0.0
  %v2755 = vmax.f32 %v2629, 0.0
  %v2756 = vmax.f32 %v2634, 0.0
  %v2757 = vmax.f32 %v2639, 0.0
  %v2758 = vmax.f32 %v2644, 0.0
  %v2759 = vmax.f32 %v2649, 0.0
  %v2760 = vmax.f32 %v2654, 0.0
  %v2761 = vmax.f32 %v2659, 0.0
  %v2762 = vmax.f32 %v2664, 0.0
  %v2763 = vmax.f32 %v2669, 0.0
  %v2764 = vmax.f32 %v2674, 0.0
  %v2765 = vmax.f32 %v2679, 0.0
  %v2766 = vmax.f32 %v2684, 0.0
  %v2767 = vmax.f32 %v2689, 0.0
  %v2768 = vmax.f32 %v2694, 0.0
  %v2769 = vmax.f32 %v2699, 0.0
  %v2770 = vmax.f32 %v2704, 0.0
  %v2771 = vmax.f32 %v2709, 0.0
  %v2772 = vmax.f32 %v2714, 0.0
  %v2773 = vmax.f32 %v2719, 0.0
  %v2774 = vmax.f32 %v2724, 0.0
  %v2775 = vmax.f32 %v2729, 0.0
  %v2776 = vmax.f32 %v2734, 0.0
  %v2777 = vmax.f32 %v2739, 0.0
  %v2778 = vmax.f32 %v2744, 0.0
  %v2779 = vld [vmem:[%s7] sm:$0xff]
  %v2780 = vld [vmem:[%s7 + $0x8] sm:$0xff]
  %v2781 = vld [vmem:[%s8] sm:$0xff]
  %2783 = vset.pattern.permute.xlu0 0
  %2784 = vperm.xlu0 %2783, %v2781
  %v2785 = vpop.permute.xlu0 %2784
  %2787 = vmatprep.subr.mxu0 0.0
  %2788 = vmatpush1.msra.mxu0 %v2747
  %2789 = vmatprep.subr.mxu0 0.0
  %2790 = vmatpush1.msra.mxu0 %v2748
  %2791 = vmatprep.subr.mxu0 0.0
  %2792 = vmatpush1.msra.mxu0 %v2749
  %2793 = vmatprep.subr.mxu0 0.0
  %2794 = vmatpush1.msra.mxu0 %v2750
  %2795 = vmatprep.subr.mxu0 0.0
  %2796 = vmatpush1.msra.mxu0 %v2751
  %2797 = vmatprep.subr.mxu0 0.0
  %2798 = vmatpush1.msra.mxu0 %v2752
  %2799 = vmatprep.subr.mxu0 0.0
  %2800 = vmatpush1.msra.mxu0 %v2753
  %2801 = vmatprep.subr.mxu0 0.0
  %2802 = vmatpush1.msra.mxu0 %v2754
  %2803 = vmatprep.subr.mxu0 0.0
  %2804 = vmatpush1.msra.mxu0 %v2755
  %2805 = vmatprep.subr.mxu0 0.0
  %2806 = vmatpush1.msra.mxu0 %v2756
  %2807 = vmatprep.subr.mxu0 0.0
  %2808 = vmatpush1.msra.mxu0 %v2757
  %2809 = vmatprep.subr.mxu0 0.0
  %2810 = vmatpush1.msra.mxu0 %v2758
  %2811 = vmatprep.subr.mxu0 0.0
  %2812 = vmatpush1.msra.mxu0 %v2759
  %2813 = vmatprep.subr.mxu0 0.0
  %2814 = vmatpush1.msra.mxu0 %v2760
  %2815 = vmatprep.subr.mxu0 0.0
  %2816 = vmatpush1.msra.mxu0 %v2761
  %2817 = vmatprep.subr.mxu0 0.0
  %2818 = vmatpush1.msra.mxu0 %v2762
  %2819 = vmatprep.subr.mxu0 0.0
  %2820 = vmatpush1.msra.mxu0 %v2763
  %2821 = vmatprep.subr.mxu0 0.0
  %2822 = vmatpush1.msra.mxu0 %v2764
  %2823 = vmatprep.subr.mxu0 0.0
  %2824 = vmatpush1.msra.mxu0 %v2765
  %2825 = vmatprep.subr.mxu0 0.0
  %2826 = vmatpush1.msra.mxu0 %v2766
  %2827 = vmatprep.subr.mxu0 0.0
  %2828 = vmatpush1.msra.mxu0 %v2767
  %2829 = vmatprep.subr.mxu0 0.0
  %2830 = vmatpush1.msra.mxu0 %v2768
  %2831 = vmatprep.subr.mxu0 0.0
  %2832 = vmatpush1.msra.mxu0 %v2769
  %2833 = vmatprep.subr.mxu0 0.0
  %2834 = vmatpush1.msra.mxu0 %v2770
  %2835 = vmatprep.subr.mxu0 0.0
  %2836 = vmatpush1.msra.mxu0 %v2771
  %2837 = vmatprep.subr.mxu0 0.0
  %2838 = vmatpush1.msra.mxu0 %v2772
  %2839 = vmatprep.subr.mxu0 0.0
  %2840 = vmatpush1.msra.mxu0 %v2773
  %2841 = vmatprep.subr.mxu0 0.0
  %2842 = vmatpush1.msra.mxu0 %v2774
  %2843 = vmatprep.subr.mxu0 0.0
  %2844 = vmatpush1.msra.mxu0 %v2775
  %2845 = vmatprep.subr.mxu0 0.0
  %2846 = vmatpush1.msra.mxu0 %v2776
  %2847 = vmatprep.subr.mxu0 0.0
  %2848 = vmatpush1.msra.mxu0 %v2777
  %2849 = vmatprep.subr.mxu0 0.0
  %2850 = vmatpush1.msra.mxu0 %v2778
  %2851 = vmatprep.mubr.f32.mxu0 %v2780
  %2852 = vmatmul.mubr.f32.gmra.mrb[0].mxu0 %v2779
  %v2853 = vpop.f32.mrb[0].mxu0
  %v2854 = vadd.f32 %v2785, %v2853
  %v2855 = vpop.f32.mrb[0].mxu0
  %2856 = vdwg.mxu0
  %2857 = vst [vmem:[%s9] sm:$0xff] %v2854
  // Predicated region
  $region38: #{cnn_forward.1} parent=0 // pred_check
    _
  $region39: #{cnn_forward.1} parent=0 // pred_check_branch
    %2859 = sbr.rel (0) target = $region41
  $region40: #{cnn_forward.1} parent=0 // pred_region
    _
  $region41: #{cnn_forward.1} parent=0 // pred_fallthru
    _
  // Predicated region
  $region42: #{cnn_forward.1} parent=0 // pred_check
    _
  $region43: #{cnn_forward.1} parent=0 // pred_check_branch
    %2861 = sbr.rel (0) target = $region45
  $region44: #{cnn_forward.1} parent=0 // pred_region
    _
  $region45: #{cnn_forward.1} parent=0 // pred_fallthru
    _

</llo_original>
